<compile_context>
chip_gen: v7x
topology: tpu7x:2x2x1
jax: 0.10.0
libtpu: 0.0.40
codegen_flags: <defaults>
</compile_context>

<pallas_src>
import functools
import math

import jax
import jax.numpy as jnp
from jax.experimental import pallas as pl
from jax.experimental.pallas import tpu as pltpu

EPS = 1e-5
LANES = 128


def _round_up(x, m):
    return (x + m - 1) // m * m


# --------------------------------------------------------------- pass 1 -----
def _conv_stats_kernel(xt_ref, w_ref, conv_ref, stats_ref):
    """One M-tile: 3x3 conv as a single bf16 matmul with K = 9*Cp (f32 acc),
    plus per-tile per-channel sum / sum-of-squares partials for BatchNorm."""
    acc = jnp.dot(xt_ref[...], w_ref[...], preferred_element_type=jnp.float32)
    conv_ref[...] = acc.astype(conv_ref.dtype)
    s = jnp.concatenate(
        [jnp.sum(acc, axis=0, keepdims=True),
         jnp.sum(acc * acc, axis=0, keepdims=True)], axis=0)       # (2, Cp)
    stats_ref[...] = s[None, :, :]


def _conv_pass(xt, w, *, tile_m):
    mp, k = xt.shape
    cp = w.shape[1]
    nt = mp // tile_m
    return pl.pallas_call(
        _conv_stats_kernel,
        out_shape=(
            jax.ShapeDtypeStruct((mp, cp), jnp.bfloat16),      # raw conv output
            jax.ShapeDtypeStruct((nt, 2, cp), jnp.float32),    # per-tile sum / sumsq
        ),
        grid=(nt,),
        in_specs=[
            pl.BlockSpec((tile_m, k), lambda i: (i, 0)),
            pl.BlockSpec((k, cp), lambda i: (0, 0)),           # weights resident
        ],
        out_specs=(
            pl.BlockSpec((tile_m, cp), lambda i: (i, 0)),
            pl.BlockSpec((1, 2, cp), lambda i: (i, 0, 0)),
        ),
        compiler_params=pltpu.CompilerParams(
            dimension_semantics=("parallel",)),
    )(xt, w)


# --------------------------------------------------------------- pass 2 -----
def _bn_act_kernel(conv_ref, scale_ref, shift_ref, out_ref):
    y = conv_ref[...].astype(jnp.float32) * scale_ref[...] + shift_ref[...]
    out_ref[...] = jnp.maximum(y, 0.0).astype(out_ref.dtype)


def _bn_add_act_kernel(conv_ref, scale_ref, shift_ref, res_ref, out_ref):
    y = conv_ref[...].astype(jnp.float32) * scale_ref[...] + shift_ref[...]
    y = y + res_ref[...].astype(jnp.float32)
    out_ref[...] = jnp.maximum(y, 0.0).astype(out_ref.dtype)


def _bn_act_pass(conv, scale, shift, residual, *, tile_m, out_dtype):
    mp, cp = conv.shape
    nt = mp // tile_m
    tile_spec = pl.BlockSpec((tile_m, cp), lambda i: (i, 0))
    vec_spec = pl.BlockSpec((1, cp), lambda i: (0, 0))
    if residual is None:
        kernel = _bn_act_kernel
        in_specs = [tile_spec, vec_spec, vec_spec]
        args = (conv, scale, shift)
    else:
        kernel = _bn_add_act_kernel
        in_specs = [tile_spec, vec_spec, vec_spec, tile_spec]
        args = (conv, scale, shift, residual)
    return pl.pallas_call(
        kernel,
        out_shape=jax.ShapeDtypeStruct((mp, cp), out_dtype),
        grid=(nt,),
        in_specs=in_specs,
        out_specs=tile_spec,
        compiler_params=pltpu.CompilerParams(
            dimension_semantics=("parallel",)),
    )(*args)


# --------------------------------------------------------------- wrapper ----
def _im2col3x3(x_nhwc, m_pad):
    """(N, H, W, Cp) -> (m_pad, 9*Cp): the 3x3 taps folded into the contraction
    dim; rows beyond N*H*W are zero (they contribute 0 to the BN partials)."""
    n, h, w, c = x_nhwc.shape
    xp = jnp.pad(x_nhwc, ((0, 0), (1, 1), (1, 1), (0, 0)))
    taps = [xp[:, dy:dy + h, dx:dx + w, :].reshape(n * h * w, c)
            for dy in range(3) for dx in range(3)]
    xt = jnp.concatenate(taps, axis=-1)
    if m_pad > n * h * w:
        xt = jnp.pad(xt, ((0, m_pad - n * h * w), (0, 0)))
    return xt


def _weight_to_matrix(w_oihw, cp):
    """(Cout, Cin, 3, 3) -> (9*Cp, Cp) bf16, zero-padded; K = tap-major, cin-minor."""
    cout, cin, _, _ = w_oihw.shape
    wt = jnp.transpose(w_oihw, (2, 3, 1, 0))                  # (ky, kx, cin, cout)
    wt = jnp.pad(wt, ((0, 0), (0, 0), (0, cp - cin), (0, cp - cout)))
    return wt.reshape(9 * cp, cp).astype(jnp.bfloat16)


def _bn_scale_shift(stats, gamma_p, beta_p, m_true):
    """Fold training-mode BatchNorm (biased variance) into per-channel scale/shift."""
    total = jnp.sum(stats, axis=0)                            # (2, Cp)
    mean = total[0] / m_true
    var = jnp.maximum(total[1] / m_true - mean * mean, 0.0)
    scale = gamma_p * jax.lax.rsqrt(var + EPS)
    shift = beta_p - mean * scale
    return scale.reshape(1, -1), shift.reshape(1, -1)


def resnet_block_forward(x_nchw, params, *, tile_m=512):
    """Forward of _ResNetBlock (stride=1, downsample=None). NCHW in/out, f32."""
    w1, g1, b1, w2, g2, b2 = params
    n, c, h, w = x_nchw.shape
    p = w1.shape[0]
    assert c == p, "downsample=None requires inplanes == planes"
    assert tile_m % 8 == 0

    cp = max(_round_up(c, LANES), LANES)      # lane-dense channel padding
    m = n * h * w
    mp = _round_up(m, tile_m)

    # NCHW -> NHWC, bf16 data path, channels zero-padded to Cp.
    x_nhwc = jnp.transpose(x_nchw, (0, 2, 3, 1)).astype(jnp.bfloat16)
    x_p = jnp.pad(x_nhwc, ((0, 0), (0, 0), (0, 0), (0, cp - c)))

    w1_m = _weight_to_matrix(w1, cp)
    w2_m = _weight_to_matrix(w2, cp)
    g1_p = jnp.pad(g1.astype(jnp.float32), (0, cp - c))
    b1_p = jnp.pad(b1.astype(jnp.float32), (0, cp - c))
    g2_p = jnp.pad(g2.astype(jnp.float32), (0, cp - c))
    b2_p = jnp.pad(b2.astype(jnp.float32), (0, cp - c))

    # --- stage 1: conv1 -> bn1 -> relu (no residual read) --------------------
    # TODO(synk): generate the 9 shifted taps in-kernel from the padded NHWC
    # input (row-halo DMA / pltpu.roll) instead of materializing im2col in HBM.
    xt1 = _im2col3x3(x_p, mp)
    conv1, st1 = _conv_pass(xt1, w1_m, tile_m=tile_m)
    scale1, shift1 = _bn_scale_shift(st1, g1_p, b1_p, m)
    mid = _bn_act_pass(conv1, scale1, shift1, None,
                       tile_m=tile_m, out_dtype=jnp.bfloat16)

    # --- stage 2: conv2 -> bn2 -> +identity -> relu ---------------------------
    # TODO(synk): fuse stage 2's conv with stage 1's epilogue per M-tile
    # (needs a 1-row halo exchange) to avoid the HBM round trip of `mid`.
    xt2 = _im2col3x3(mid[:m].reshape(n, h, w, cp), mp)
    conv2, st2 = _conv_pass(xt2, w2_m, tile_m=tile_m)
    scale2, shift2 = _bn_scale_shift(st2, g2_p, b2_p, m)
    res = x_p.reshape(m, cp)
    if mp > m:
        res = jnp.pad(res, ((0, mp - m), (0, 0)))
    out = _bn_act_pass(conv2, scale2, shift2, res,
                       tile_m=tile_m, out_dtype=jnp.float32)

    out = out[:m, :c].reshape(n, h, w, c)
    return jnp.transpose(out, (0, 3, 1, 2))                   # NHWC -> NCHW


def _reference_forward(x_nchw, params):
    """Pure-JAX f32 reference matching the PyTorch module (training-mode BN)."""
    w1, g1, b1, w2, g2, b2 = params

    def conv3x3(x, w):
        return jax.lax.conv_general_dilated(
            x, w, window_strides=(1, 1), padding=((1, 1), (1, 1)),
            dimension_numbers=("NCHW", "OIHW", "NCHW"))

    def bn(x, g, b):
        mean = jnp.mean(x, axis=(0, 2, 3), keepdims=True)
        var = jnp.mean((x - mean) ** 2, axis=(0, 2, 3), keepdims=True)
        return (x - mean) * jax.lax.rsqrt(var + EPS) * g.reshape(1, -1, 1, 1) \
            + b.reshape(1, -1, 1, 1)

    out = jax.nn.relu(bn(conv3x3(x_nchw, w1), g1, b1))
    out = bn(conv3x3(out, w2), g2, b2) + x_nchw
    return jax.nn.relu(out)


if __name__ == "__main__":
    # Small shapes consistent with the module (inplanes == planes, no downsample).
    N, C, H, W = 2, 8, 16, 16
    planes = C

    key = jax.random.PRNGKey(0)
    kx, kw1, kw2 = jax.random.split(key, 3)

    x = jax.random.normal(kx, (N, C, H, W), dtype=jnp.float32)

    # kaiming_normal_(mode='fan_out', nonlinearity='relu'): std = sqrt(2/(Cout*9))
    std = math.sqrt(2.0 / (planes * 3 * 3))
    w1 = jax.random.normal(kw1, (planes, C, 3, 3), dtype=jnp.float32) * std
    w2 = jax.random.normal(kw2, (planes, planes, 3, 3), dtype=jnp.float32) * std
    g1 = jnp.ones((planes,), jnp.float32)
    b1 = jnp.zeros((planes,), jnp.float32)
    g2 = jnp.ones((planes,), jnp.float32)
    b2 = jnp.zeros((planes,), jnp.float32)
    params = (w1, g1, b1, w2, g2, b2)

    # tile_m=128 so the small test exercises the multi-tile (cross-tile BN) path.
    fwd = jax.jit(functools.partial(resnet_block_forward, tile_m=128))
    out = jax.block_until_ready(fwd(x, params))

    ref = jax.block_until_ready(_reference_forward(x, params))
    assert out.shape == (N, planes, H, W)

    # bf16 MXU inputs / activations (f32 accumulation + f32 BN stats):
    # tolerance loosened vs the pure-f32 reference accordingly.
    max_abs = float(jnp.max(jnp.abs(out - ref)))
    rel_l2 = float(jnp.linalg.norm(out - ref) / jnp.linalg.norm(ref))
    assert max_abs < 1e-1, f"max abs err {max_abs}"
    assert rel_l2 < 3e-2, f"relative L2 err {rel_l2}"

    print("KERNEL_OK")
</pallas_src>

<mosaic_0001>
module attributes {stable_mosaic.version = 11 : i64} {
  func.func @_conv_stats_kernel(%arg0: i32, %arg1: memref<128x1152xbf16, #tpu.memory_space<vmem>>, %arg2: memref<1152x128xbf16, #tpu.memory_space<vmem>>, %arg3: memref<128x128xbf16, #tpu.memory_space<vmem>>, %arg4: memref<1x2x128xf32, #tpu.memory_space<vmem>>) attributes {dimension_semantics = [#tpu.dimension_semantics<parallel>], iteration_bounds = array<i64: 4>, scalar_prefetch = 0 : i64, scratch_operands = 0 : i64, tpu.core_type = #tpu.core_type<tc>, window_params = [{transform_indices = @transform_0, window_bounds = array<i64: 128, 1152>}, {pipeline_mode = #tpu.pipeline_mode<synchronous>, transform_indices = @transform_1, window_bounds = array<i64: 1152, 128>}, {transform_indices = @transform_2, window_bounds = array<i64: 128, 128>}, {transform_indices = @transform_3, window_bounds = array<i64: 1, 2, 128>}]} {
    %c0 = arith.constant 0 : index
    %c0_0 = arith.constant 0 : index
    %0 = vector.load %arg1[%c0, %c0_0] : memref<128x1152xbf16, #tpu.memory_space<vmem>>, vector<128x1152xbf16>
    %c0_1 = arith.constant 0 : index
    %c0_2 = arith.constant 0 : index
    %1 = vector.load %arg2[%c0_1, %c0_2] : memref<1152x128xbf16, #tpu.memory_space<vmem>>, vector<1152x128xbf16>
    %cst = arith.constant dense<0.000000e+00> : vector<128x128xf32>
    %2 = tpu.matmul %0, %1, %cst {dimension_numbers = #tpu.dot_dimension_numbers<[1], [0], [0], [1], [0, 0, 1, 1], [], []>} : vector<128x1152xbf16>, vector<1152x128xbf16>, vector<128x128xf32> -> vector<128x128xf32>
    %3 = arith.truncf %2 : vector<128x128xf32> to vector<128x128xbf16>
    %c0_3 = arith.constant 0 : index
    %c0_4 = arith.constant 0 : index
    %4 = vector.load %arg3[%c0_3, %c0_4] : memref<128x128xbf16, #tpu.memory_space<vmem>>, vector<128x128xbf16>
    tpu.vector_store %arg3[%c0_3, %c0_4], %3 {strides = array<i32>} : memref<128x128xbf16, #tpu.memory_space<vmem>>, vector<128x128xbf16>,
    %cst_5 = arith.constant dense<0.000000e+00> : vector<128xf32>
    %5 = vector.multi_reduction <add>, %2, %cst_5 [0] : vector<128x128xf32> to vector<128xf32>
    %6 = vector.shape_cast %5 : vector<128xf32> to vector<1x128xf32>
    %7 = arith.mulf %2, %2 : vector<128x128xf32>
    %cst_6 = arith.constant dense<0.000000e+00> : vector<128xf32>
    %8 = vector.multi_reduction <add>, %7, %cst_6 [0] : vector<128x128xf32> to vector<128xf32>
    %9 = vector.shape_cast %8 : vector<128xf32> to vector<1x128xf32>
    %10 = tpu.concatenate %6, %9 in 0 : vector<1x128xf32>, vector<1x128xf32> -> vector<2x128xf32>
    %11 = vector.shape_cast %10 : vector<2x128xf32> to vector<1x2x128xf32>
    %c0_7 = arith.constant 0 : index
    %c0_8 = arith.constant 0 : index
    %c0_9 = arith.constant 0 : index
    %12 = vector.load %arg4[%c0_7, %c0_8, %c0_9] : memref<1x2x128xf32, #tpu.memory_space<vmem>>, vector<1x2x128xf32>
    tpu.vector_store %arg4[%c0_7, %c0_8, %c0_9], %11 {strides = array<i32>} : memref<1x2x128xf32, #tpu.memory_space<vmem>>, vector<1x2x128xf32>,
    return
  }
  func.func @transform_0(%arg0: i32) -> (i32, i32) {
    %c0_i32 = arith.constant 0 : i32
    %c0_i32_0 = arith.constant 0 : i32
    return %arg0, %c0_i32 : i32, i32
  }
  func.func @transform_1(%arg0: i32) -> (i32, i32) {
    %c0_i32 = arith.constant 0 : i32
    %c0_i32_0 = arith.constant 0 : i32
    %c0_i32_1 = arith.constant 0 : i32
    return %c0_i32, %c0_i32_0 : i32, i32
  }
  func.func @transform_2(%arg0: i32) -> (i32, i32) {
    %c0_i32 = arith.constant 0 : i32
    %c0_i32_0 = arith.constant 0 : i32
    return %arg0, %c0_i32 : i32, i32
  }
  func.func @transform_3(%arg0: i32) -> (i32, i32, i32) {
    %c0_i32 = arith.constant 0 : i32
    %c0_i32_0 = arith.constant 0 : i32
    %c0_i32_1 = arith.constant 0 : i32
    return %arg0, %c0_i32, %c0_i32_0 : i32, i32, i32
  }
}

module attributes {stable_mosaic.version = 11 : i64} {
  func.func @_bn_act_kernel(%arg0: i32, %arg1: memref<128x128xbf16, #tpu.memory_space<vmem>>, %arg2: memref<1x128xf32, #tpu.memory_space<vmem>>, %arg3: memref<1x128xf32, #tpu.memory_space<vmem>>, %arg4: memref<128x128xbf16, #tpu.memory_space<vmem>>) attributes {dimension_semantics = [#tpu.dimension_semantics<parallel>], iteration_bounds = array<i64: 4>, scalar_prefetch = 0 : i64, scratch_operands = 0 : i64, tpu.core_type = #tpu.core_type<tc>, window_params = [{transform_indices = @transform_0, window_bounds = array<i64: 128, 128>}, {pipeline_mode = #tpu.pipeline_mode<synchronous>, transform_indices = @transform_1, window_bounds = array<i64: 1, 128>}, {pipeline_mode = #tpu.pipeline_mode<synchronous>, transform_indices = @transform_2, window_bounds = array<i64: 1, 128>}, {transform_indices = @transform_3, window_bounds = array<i64: 128, 128>}]} {
    %c0 = arith.constant 0 : index
    %c0_0 = arith.constant 0 : index
    %0 = vector.load %arg1[%c0, %c0_0] : memref<128x128xbf16, #tpu.memory_space<vmem>>, vector<128x128xbf16>
    %1 = arith.extf %0 : vector<128x128xbf16> to vector<128x128xf32>
    %c0_1 = arith.constant 0 : index
    %c0_2 = arith.constant 0 : index
    %2 = vector.load %arg2[%c0_1, %c0_2] : memref<1x128xf32, #tpu.memory_space<vmem>>, vector<1x128xf32>
    %3 = vector.broadcast %2 : vector<1x128xf32> to vector<128x128xf32>
    %4 = arith.mulf %1, %3 : vector<128x128xf32>
    %c0_3 = arith.constant 0 : index
    %c0_4 = arith.constant 0 : index
    %5 = vector.load %arg3[%c0_3, %c0_4] : memref<1x128xf32, #tpu.memory_space<vmem>>, vector<1x128xf32>
    %6 = vector.broadcast %5 : vector<1x128xf32> to vector<128x128xf32>
    %7 = arith.addf %4, %6 : vector<128x128xf32>
    %cst = arith.constant 0.000000e+00 : f32
    %8 = vector.broadcast %cst : f32 to vector<128x128xf32>
    %9 = arith.maximumf %7, %8 : vector<128x128xf32>
    %10 = arith.truncf %9 : vector<128x128xf32> to vector<128x128xbf16>
    %c0_5 = arith.constant 0 : index
    %c0_6 = arith.constant 0 : index
    %11 = vector.load %arg4[%c0_5, %c0_6] : memref<128x128xbf16, #tpu.memory_space<vmem>>, vector<128x128xbf16>
    tpu.vector_store %arg4[%c0_5, %c0_6], %10 {strides = array<i32>} : memref<128x128xbf16, #tpu.memory_space<vmem>>, vector<128x128xbf16>,
    return
  }
  func.func @transform_0(%arg0: i32) -> (i32, i32) {
    %c0_i32 = arith.constant 0 : i32
    %c0_i32_0 = arith.constant 0 : i32
    return %arg0, %c0_i32 : i32, i32
  }
  func.func @transform_1(%arg0: i32) -> (i32, i32) {
    %c0_i32 = arith.constant 0 : i32
    %c0_i32_0 = arith.constant 0 : i32
    %c0_i32_1 = arith.constant 0 : i32
    return %c0_i32, %c0_i32_0 : i32, i32
  }
  func.func @transform_2(%arg0: i32) -> (i32, i32) {
    %c0_i32 = arith.constant 0 : i32
    %c0_i32_0 = arith.constant 0 : i32
    %c0_i32_1 = arith.constant 0 : i32
    return %c0_i32, %c0_i32_0 : i32, i32
  }
  func.func @transform_3(%arg0: i32) -> (i32, i32) {
    %c0_i32 = arith.constant 0 : i32
    %c0_i32_0 = arith.constant 0 : i32
    return %arg0, %c0_i32 : i32, i32
  }
}

module attributes {stable_mosaic.version = 11 : i64} {
  func.func @_bn_add_act_kernel(%arg0: i32, %arg1: memref<128x128xbf16, #tpu.memory_space<vmem>>, %arg2: memref<1x128xf32, #tpu.memory_space<vmem>>, %arg3: memref<1x128xf32, #tpu.memory_space<vmem>>, %arg4: memref<128x128xbf16, #tpu.memory_space<vmem>>, %arg5: memref<128x128xf32, #tpu.memory_space<vmem>>) attributes {dimension_semantics = [#tpu.dimension_semantics<parallel>], iteration_bounds = array<i64: 4>, scalar_prefetch = 0 : i64, scratch_operands = 0 : i64, tpu.core_type = #tpu.core_type<tc>, window_params = [{transform_indices = @transform_0, window_bounds = array<i64: 128, 128>}, {pipeline_mode = #tpu.pipeline_mode<synchronous>, transform_indices = @transform_1, window_bounds = array<i64: 1, 128>}, {pipeline_mode = #tpu.pipeline_mode<synchronous>, transform_indices = @transform_2, window_bounds = array<i64: 1, 128>}, {transform_indices = @transform_3, window_bounds = array<i64: 128, 128>}, {transform_indices = @transform_4, window_bounds = array<i64: 128, 128>}]} {
    %c0 = arith.constant 0 : index
    %c0_0 = arith.constant 0 : index
    %0 = vector.load %arg1[%c0, %c0_0] : memref<128x128xbf16, #tpu.memory_space<vmem>>, vector<128x128xbf16>
    %1 = arith.extf %0 : vector<128x128xbf16> to vector<128x128xf32>
    %c0_1 = arith.constant 0 : index
    %c0_2 = arith.constant 0 : index
    %2 = vector.load %arg2[%c0_1, %c0_2] : memref<1x128xf32, #tpu.memory_space<vmem>>, vector<1x128xf32>
    %3 = vector.broadcast %2 : vector<1x128xf32> to vector<128x128xf32>
    %4 = arith.mulf %1, %3 : vector<128x128xf32>
    %c0_3 = arith.constant 0 : index
    %c0_4 = arith.constant 0 : index
    %5 = vector.load %arg3[%c0_3, %c0_4] : memref<1x128xf32, #tpu.memory_space<vmem>>, vector<1x128xf32>
    %6 = vector.broadcast %5 : vector<1x128xf32> to vector<128x128xf32>
    %7 = arith.addf %4, %6 : vector<128x128xf32>
    %c0_5 = arith.constant 0 : index
    %c0_6 = arith.constant 0 : index
    %8 = vector.load %arg4[%c0_5, %c0_6] : memref<128x128xbf16, #tpu.memory_space<vmem>>, vector<128x128xbf16>
    %9 = arith.extf %8 : vector<128x128xbf16> to vector<128x128xf32>
    %10 = arith.addf %7, %9 : vector<128x128xf32>
    %cst = arith.constant 0.000000e+00 : f32
    %11 = vector.broadcast %cst : f32 to vector<128x128xf32>
    %12 = arith.maximumf %10, %11 : vector<128x128xf32>
    %c0_7 = arith.constant 0 : index
    %c0_8 = arith.constant 0 : index
    %13 = vector.load %arg5[%c0_7, %c0_8] : memref<128x128xf32, #tpu.memory_space<vmem>>, vector<128x128xf32>
    tpu.vector_store %arg5[%c0_7, %c0_8], %12 {strides = array<i32>} : memref<128x128xf32, #tpu.memory_space<vmem>>, vector<128x128xf32>,
    return
  }
  func.func @transform_0(%arg0: i32) -> (i32, i32) {
    %c0_i32 = arith.constant 0 : i32
    %c0_i32_0 = arith.constant 0 : i32
    return %arg0, %c0_i32 : i32, i32
  }
  func.func @transform_1(%arg0: i32) -> (i32, i32) {
    %c0_i32 = arith.constant 0 : i32
    %c0_i32_0 = arith.constant 0 : i32
    %c0_i32_1 = arith.constant 0 : i32
    return %c0_i32, %c0_i32_0 : i32, i32
  }
  func.func @transform_2(%arg0: i32) -> (i32, i32) {
    %c0_i32 = arith.constant 0 : i32
    %c0_i32_0 = arith.constant 0 : i32
    %c0_i32_1 = arith.constant 0 : i32
    return %c0_i32, %c0_i32_0 : i32, i32
  }
  func.func @transform_3(%arg0: i32) -> (i32, i32) {
    %c0_i32 = arith.constant 0 : i32
    %c0_i32_0 = arith.constant 0 : i32
    return %arg0, %c0_i32 : i32, i32
  }
  func.func @transform_4(%arg0: i32) -> (i32, i32) {
    %c0_i32 = arith.constant 0 : i32
    %c0_i32_0 = arith.constant 0 : i32
    return %arg0, %c0_i32 : i32, i32
  }
}

</mosaic_0001>

<llo_original>
// kernel: resnet_block_forward.5
$region0: #{resnet_block_forward.5}
  #allocation0 [shape = 'u32[]', space=smem, size = 0x4, offset = 0x4, fixed_abs, tag = 'smem constant byte address 0x4 - core index']
  #allocation1 [shape = 'u32[144,128]{1,0:T(1,128)}', space=vmem, size = 0x12000, scoped, tag = 'internal scratch']
  %s0 = inlined_call_operand.vmem [shape: bf16[512,128], index: 0, kind: input, shape index: {}]
  %s1 = inlined_call_operand.vmem [shape: f32[1,128], index: 1, kind: input, shape index: {}]
  %s2 = inlined_call_operand.vmem [shape: f32[1,128], index: 2, kind: input, shape index: {}]
  %s3 = inlined_call_operand.vmem [shape: bf16[512,128], index: 3, kind: output, shape index: {}]
  %s4 = sld [smem:[#allocation0]]
  $region45: #{resnet_block_forward.5} parent=0
    _
  %s6 = ssub.s32 1, %s4
  %s7 = scalar_select 0, %s6, %s4
  loop: start=0, step=1, limit=6
  $region2: #{resnet_block_forward.5} parent=0 // loop_pre_header
    _
  $region3: #{resnet_block_forward.5} parent=0 // loop_header
    %s9 = sphi 0, %s13
    %p10 = scmp.ge.s32.totalorder %s9, 6
    %s19 = sphi 0, %s21
    %s22 = sphi 0, %s19
    %s23 = sphi 0, %s22
    %s39 = sphi 0, %s23
    %s43 = sphi 0, %s43
    %s45 = sphi 0, %s43
    %s46 = sphi 0, %s45
    %s60 = sphi 0, %s46
    %s64 = sphi 0, %s64
    %s66 = sphi 0, %s64
    %s67 = sphi 0, %s66
    %s81 = sphi 0, %s67
    %s87 = sphi 0, %s89
    %s90 = sphi 0, %s87
    %s91 = sphi 0, %s90
    %s107 = sphi 0, %s91
  $region4: #{resnet_block_forward.5} parent=0 // loop_header_branch
    %12 = sbr.rel (%p10) target = $region8
  $region5: #{resnet_block_forward.5} parent=0 // loop_body
    %s14 = ssub.s32 %s9, 1
    %s15 = ssub.s32 %s9, 2
    %s16 = sadd.s32 %s9, 1
    %s17 = ssub.s32 %s9, %s16
    %p18 = scmp.eq.s32.totalorder %s17, 0
    %s20 = sadd.s32 %s19, 1
    %s21 = scalar_select %p18, %s19, %s20
    %p24 = pneg %p18
    %p25 = scmp.eq.s32.totalorder %s9, 3
    %p26 = por %p24, %p25
    %p27 = scmp.ne.s32.totalorder %s19, %s22
    %p28 = scmp.eq.s32.totalorder %s9, 0
    %p29 = por %p27, %p28
    %p30 = scmp.ne.s32.totalorder %s19, %s22
    %p31 = scmp.eq.s32.totalorder %s14, 3
    %p32 = por %p30, %p31
    %p33 = scmp.ne.s32.totalorder %s22, %s23
    %p34 = scmp.eq.s32.totalorder %s14, 0
    %p35 = por %p33, %p34
    %p36 = scmp.ne.s32.totalorder %s22, %s23
    %p37 = scmp.eq.s32.totalorder %s15, 3
    %p38 = por %p36, %p37
    %p40 = scmp.ne.s32.totalorder %s23, %s39
    %p41 = scmp.eq.s32.totalorder %s15, 0
    %p42 = por %p40, %p41
    %s44 = sadd.s32 %s43, 1
    %p47 = scmp.eq.s32.totalorder %s9, 3
    %p48 = scmp.ne.s32.totalorder %s43, %s45
    %p49 = scmp.eq.s32.totalorder %s9, 0
    %p50 = por %p48, %p49
    %p51 = scmp.ne.s32.totalorder %s43, %s45
    %p52 = scmp.eq.s32.totalorder %s14, 3
    %p53 = por %p51, %p52
    %p54 = scmp.ne.s32.totalorder %s45, %s46
    %p55 = scmp.eq.s32.totalorder %s14, 0
    %p56 = por %p54, %p55
    %p57 = scmp.ne.s32.totalorder %s45, %s46
    %p58 = scmp.eq.s32.totalorder %s15, 3
    %p59 = por %p57, %p58
    %p61 = scmp.ne.s32.totalorder %s46, %s60
    %p62 = scmp.eq.s32.totalorder %s15, 0
    %p63 = por %p61, %p62
    %s65 = sadd.s32 %s64, 1
    %p68 = scmp.eq.s32.totalorder %s9, 3
    %p69 = scmp.ne.s32.totalorder %s64, %s66
    %p70 = scmp.eq.s32.totalorder %s9, 0
    %p71 = por %p69, %p70
    %p72 = scmp.ne.s32.totalorder %s64, %s66
    %p73 = scmp.eq.s32.totalorder %s14, 3
    %p74 = por %p72, %p73
    %p75 = scmp.ne.s32.totalorder %s66, %s67
    %p76 = scmp.eq.s32.totalorder %s14, 0
    %p77 = por %p75, %p76
    %p78 = scmp.ne.s32.totalorder %s66, %s67
    %p79 = scmp.eq.s32.totalorder %s15, 3
    %p80 = por %p78, %p79
    %p82 = scmp.ne.s32.totalorder %s67, %s81
    %p83 = scmp.eq.s32.totalorder %s15, 0
    %p84 = por %p82, %p83
    %s85 = ssub.s32 %s9, %s16
    %p86 = scmp.eq.s32.totalorder %s85, 0
    %s88 = sadd.s32 %s87, 1
    %s89 = scalar_select %p86, %s87, %s88
    %p92 = pneg %p86
    %p93 = scmp.eq.s32.totalorder %s9, 3
    %p94 = por %p92, %p93
    %p95 = scmp.ne.s32.totalorder %s87, %s90
    %p96 = scmp.eq.s32.totalorder %s9, 0
    %p97 = por %p95, %p96
    %p98 = scmp.ne.s32.totalorder %s87, %s90
    %p99 = scmp.eq.s32.totalorder %s14, 3
    %p100 = por %p98, %p99
    %p101 = scmp.ne.s32.totalorder %s90, %s91
    %p102 = scmp.eq.s32.totalorder %s14, 0
    %p103 = por %p101, %p102
    %p104 = scmp.ne.s32.totalorder %s90, %s91
    %p105 = scmp.eq.s32.totalorder %s15, 3
    %p106 = por %p104, %p105
    %p108 = scmp.ne.s32.totalorder %s91, %s107
    %p109 = scmp.eq.s32.totalorder %s15, 0
    %p110 = por %p108, %p109
    %p111 = scmp.le.s32.totalorder 1, %s9
    %p112 = scmp.lt.s32.totalorder %s9, 5
    %p113 = pnand %p111, %p112
    %p114 = pneg %p113
    // Predicated region
    $region9: #{resnet_block_forward.5} parent=5 // pred_check
      _
    $region10: #{resnet_block_forward.5} parent=5 // pred_check_branch
      %116 = sbr.rel (%p113) target = $region12
    $region11: #{resnet_block_forward.5} parent=5 // pred_region
      %s117 = ssub.s32 %s9, 1
      // Predicated region
      $region13: #{resnet_block_forward.5} parent=11 // pred_check
        %p118 = pneg %p56
      $region14: #{resnet_block_forward.5} parent=11 // pred_check_branch
        %120 = sbr.rel (%p118) target = $region16
      $region15: #{resnet_block_forward.5} parent=11 // pred_region
        _
      $region16: #{resnet_block_forward.5} parent=11 // pred_fallthru
        _
      // Predicated region
      $region17: #{resnet_block_forward.5} parent=11 // pred_check
        %p121 = pneg %p77
      $region18: #{resnet_block_forward.5} parent=11 // pred_check_branch
        %123 = sbr.rel (%p121) target = $region20
      $region19: #{resnet_block_forward.5} parent=11 // pred_region
        _
      $region20: #{resnet_block_forward.5} parent=11 // pred_fallthru
        _
    $region12: #{resnet_block_forward.5} parent=5 // pred_fallthru
      _
    %p124 = scmp.lt.s32.totalorder %s9, 4
    // Predicated region
    $region21: #{resnet_block_forward.5} parent=5 // pred_check
      %p125 = pneg %p124
    $region22: #{resnet_block_forward.5} parent=5 // pred_check_branch
      %127 = sbr.rel (%p125) target = $region24
    $region23: #{resnet_block_forward.5} parent=5 // pred_region
      // Predicated region
      $region25: #{resnet_block_forward.5} parent=23 // pred_check
        %p128 = pneg %p29
      $region26: #{resnet_block_forward.5} parent=23 // pred_check_branch
        %130 = sbr.rel (%p128) target = $region28
      $region27: #{resnet_block_forward.5} parent=23 // pred_region
        %s131 = smul.u32 16, %s9
        %p132 = scmp.lt.s32.totalorder %s131, 63
        %s133 = scalar_select %p132, %s131, 63
        %s134 = smul.addr %s133, 4
        %s135 = scalar_lea.vmem %s0, %s134
        %s136 = smul.u32 16, %s9
      $region28: #{resnet_block_forward.5} parent=23 // pred_fallthru
        _
    $region24: #{resnet_block_forward.5} parent=5 // pred_fallthru
      _
    %p137 = scmp.le.s32.totalorder 1, %s9
    %p138 = scmp.lt.s32.totalorder %s9, 5
    %p139 = pnand %p137, %p138
    %p140 = pneg %p139
    // Predicated region
    $region29: #{resnet_block_forward.5} parent=5 // pred_check
      _
    $region30: #{resnet_block_forward.5} parent=5 // pred_check_branch
      %142 = sbr.rel (%p139) target = $region32
    $region31: #{resnet_block_forward.5} parent=5 // pred_region
      %s143 = ssub.s32 %s9, 1
      %s144 = smul.u32 16, %s14
      %p145 = scmp.lt.s32.totalorder %s144, 63
      %s146 = scalar_select %p145, %s144, 63
      %s147 = smul.addr %s146, 4
      %s148 = scalar_lea.vmem %s0, %s147
      %p149 = pneg %p35
      %p150 = pneg %p32
      %p151 = pneg %p56
      %p152 = pneg %p53
      %p153 = pneg %p77
      %p154 = pneg %p74
      %p155 = pneg %p103
      %p156 = pneg %p100
      %s157 = smul.u32 16, %s14
      %p158 = scmp.lt.s32.totalorder %s157, 63
      %s159 = scalar_select %p158, %s157, 63
      %s160 = smul.addr %s159, 4
      %s161 = scalar_lea.vmem %s3, %s160
      %s162 = smul.u32 16, %s14
      %p163 = scmp.lt.s32.totalorder %s162, 63
      %s164 = scalar_select %p163, %s162, 63
      %s165 = smul.addr %s164, 4
      %s166 = scalar_lea.vmem %s0, %s165
      %s167 = smul.u32 16, %s14
      %s168 = smul.u32 16, %s14
      %p169 = scmp.lt.s32.totalorder %s168, 63
      %s170 = scalar_select %p169, %s168, 63
      %s171 = smul.addr %s170, 4
      %s172 = scalar_lea.vmem %s3, %s171
      %s173 = smul.u32 16, %s14
      %v174 = vld [vmem:[%s166] sm:$0xf]
      %v175 = vld [vmem:[%s166 + $0x4] sm:$0xf]
      %v176 = vld [vmem:[%s166 + $0x8] sm:$0xf]
      %v177 = vld [vmem:[%s166 + $0xc] sm:$0xf]
      %v178 = vld [vmem:[%s166 + $0x10] sm:$0xf]
      %v179 = vld [vmem:[%s166 + $0x14] sm:$0xf]
      %v180 = vld [vmem:[%s166 + $0x18] sm:$0xf]
      %v181 = vld [vmem:[%s166 + $0x1c] sm:$0xf]
      %v182 = vld [vmem:[%s166 + $0x20] sm:$0xf]
      %v183 = vld [vmem:[%s166 + $0x24] sm:$0xf]
      %v184 = vld [vmem:[%s166 + $0x28] sm:$0xf]
      %v185 = vld [vmem:[%s166 + $0x2c] sm:$0xf]
      %v186 = vld [vmem:[%s166 + $0x30] sm:$0xf]
      %v187 = vld [vmem:[%s166 + $0x34] sm:$0xf]
      %v188 = vld [vmem:[%s166 + $0x38] sm:$0xf]
      %v189 = vld [vmem:[%s166 + $0x3c] sm:$0xf]
      %v190 = vunpack.c.l.bf16 %v174
      %v191 = vunpack.c.l.bf16 %v175
      %v192 = vunpack.c.l.bf16 %v176
      %v193 = vunpack.c.l.bf16 %v177
      %v194 = vunpack.c.l.bf16 %v178
      %v195 = vunpack.c.l.bf16 %v179
      %v196 = vunpack.c.l.bf16 %v180
      %v197 = vunpack.c.l.bf16 %v181
      %v198 = vunpack.c.l.bf16 %v182
      %v199 = vunpack.c.l.bf16 %v183
      %v200 = vunpack.c.l.bf16 %v184
      %v201 = vunpack.c.l.bf16 %v185
      %v202 = vunpack.c.l.bf16 %v186
      %v203 = vunpack.c.l.bf16 %v187
      %v204 = vunpack.c.l.bf16 %v188
      %v205 = vunpack.c.l.bf16 %v189
      %v206 = vld [vmem:[%s1] sm:$0x1]
      %v208 = vlaneseq
      %v209 = vshrl.u32 %v208, 7
      %v210 = vsub.s32 0, %v209
      %v211 = vrot.slane %v206, %v210
      %v213 = vmul.f32 %v190, %v211
      %v214 = vmul.f32 %v191, %v211
      %v215 = vmul.f32 %v192, %v211
      %v216 = vmul.f32 %v193, %v211
      %v217 = vmul.f32 %v194, %v211
      %v218 = vmul.f32 %v195, %v211
      %v219 = vmul.f32 %v196, %v211
      %v220 = vmul.f32 %v197, %v211
      %v221 = vmul.f32 %v198, %v211
      %v222 = vmul.f32 %v199, %v211
      %v223 = vmul.f32 %v200, %v211
      %v224 = vmul.f32 %v201, %v211
      %v225 = vmul.f32 %v202, %v211
      %v226 = vmul.f32 %v203, %v211
      %v227 = vmul.f32 %v204, %v211
      %v228 = vmul.f32 %v205, %v211
      %v229 = vld [vmem:[%s2] sm:$0x1]
      %v231 = vlaneseq
      %v232 = vshrl.u32 %v231, 7
      %v233 = vsub.s32 0, %v232
      %v234 = vrot.slane %v229, %v233
      %v236 = vadd.f32 %v213, %v234
      %v237 = vadd.f32 %v214, %v234
      %v238 = vadd.f32 %v215, %v234
      %v239 = vadd.f32 %v216, %v234
      %v240 = vadd.f32 %v217, %v234
      %v241 = vadd.f32 %v218, %v234
      %v242 = vadd.f32 %v219, %v234
      %v243 = vadd.f32 %v220, %v234
      %v244 = vadd.f32 %v221, %v234
      %v245 = vadd.f32 %v222, %v234
      %v246 = vadd.f32 %v223, %v234
      %v247 = vadd.f32 %v224, %v234
      %v248 = vadd.f32 %v225, %v234
      %v249 = vadd.f32 %v226, %v234
      %v250 = vadd.f32 %v227, %v234
      %v251 = vadd.f32 %v228, %v234
      %v252 = vmax.f32 %v236, 0.0
      %v253 = vmax.f32 %v237, 0.0
      %v254 = vmax.f32 %v238, 0.0
      %v255 = vmax.f32 %v239, 0.0
      %v256 = vmax.f32 %v240, 0.0
      %v257 = vmax.f32 %v241, 0.0
      %v258 = vmax.f32 %v242, 0.0
      %v259 = vmax.f32 %v243, 0.0
      %v260 = vmax.f32 %v244, 0.0
      %v261 = vmax.f32 %v245, 0.0
      %v262 = vmax.f32 %v246, 0.0
      %v263 = vmax.f32 %v247, 0.0
      %v264 = vmax.f32 %v248, 0.0
      %v265 = vmax.f32 %v249, 0.0
      %v266 = vmax.f32 %v250, 0.0
      %v267 = vmax.f32 %v251, 0.0
      %v268 = vpack.c.bf16 %v253, %v252
      %v269 = vpack.c.bf16 %v255, %v254
      %v270 = vpack.c.bf16 %v257, %v256
      %v271 = vpack.c.bf16 %v259, %v258
      %v272 = vpack.c.bf16 %v261, %v260
      %v273 = vpack.c.bf16 %v263, %v262
      %v274 = vpack.c.bf16 %v265, %v264
      %v275 = vpack.c.bf16 %v267, %v266
      %v284 = vunpack.c.l.b16 %v268
      %v285 = vunpack.c.h.b16 %v268
      %v286 = vunpack.c.l.b16 %v269
      %v287 = vunpack.c.h.b16 %v269
      %v288 = vunpack.c.l.b16 %v270
      %v289 = vunpack.c.h.b16 %v270
      %v290 = vunpack.c.l.b16 %v271
      %v291 = vunpack.c.h.b16 %v271
      %v292 = vunpack.c.l.b16 %v272
      %v293 = vunpack.c.h.b16 %v272
      %v294 = vunpack.c.l.b16 %v273
      %v295 = vunpack.c.h.b16 %v273
      %v296 = vunpack.c.l.b16 %v274
      %v297 = vunpack.c.h.b16 %v274
      %v298 = vunpack.c.l.b16 %v275
      %v299 = vunpack.c.h.b16 %v275
      %v300 = vpack.c.b16 %v284, %v284
      %v301 = vpack.c.b16 %v285, %v285
      %v302 = vpack.c.b16 %v286, %v286
      %v303 = vpack.c.b16 %v287, %v287
      %v304 = vpack.c.b16 %v288, %v288
      %v305 = vpack.c.b16 %v289, %v289
      %v306 = vpack.c.b16 %v290, %v290
      %v307 = vpack.c.b16 %v291, %v291
      %v308 = vpack.c.b16 %v292, %v292
      %v309 = vpack.c.b16 %v293, %v293
      %v310 = vpack.c.b16 %v294, %v294
      %v311 = vpack.c.b16 %v295, %v295
      %v312 = vpack.c.b16 %v296, %v296
      %v313 = vpack.c.b16 %v297, %v297
      %v314 = vpack.c.b16 %v298, %v298
      %v315 = vpack.c.b16 %v299, %v299
      %332 = vst [vmem:[%s172] sm:$0xf] %v300
      %333 = vst [vmem:[%s172 + $0x4] sm:$0xf] %v301
      %334 = vst [vmem:[%s172 + $0x8] sm:$0xf] %v302
      %335 = vst [vmem:[%s172 + $0xc] sm:$0xf] %v303
      %336 = vst [vmem:[%s172 + $0x10] sm:$0xf] %v304
      %337 = vst [vmem:[%s172 + $0x14] sm:$0xf] %v305
      %338 = vst [vmem:[%s172 + $0x18] sm:$0xf] %v306
      %339 = vst [vmem:[%s172 + $0x1c] sm:$0xf] %v307
      %340 = vst [vmem:[%s172 + $0x20] sm:$0xf] %v308
      %341 = vst [vmem:[%s172 + $0x24] sm:$0xf] %v309
      %342 = vst [vmem:[%s172 + $0x28] sm:$0xf] %v310
      %343 = vst [vmem:[%s172 + $0x2c] sm:$0xf] %v311
      %344 = vst [vmem:[%s172 + $0x30] sm:$0xf] %v312
      %345 = vst [vmem:[%s172 + $0x34] sm:$0xf] %v313
      %346 = vst [vmem:[%s172 + $0x38] sm:$0xf] %v314
      %347 = vst [vmem:[%s172 + $0x3c] sm:$0xf] %v315
      %s348 = smul.u32 16, %s14
      %p349 = scmp.lt.s32.totalorder %s348, 63
      %s350 = scalar_select %p349, %s348, 63
      %s351 = smul.addr %s350, 4
      %s352 = scalar_lea.vmem %s3, %s351
      // Predicated region
      $region33: #{resnet_block_forward.5} parent=31 // pred_check
        %p353 = pneg %p100
      $region34: #{resnet_block_forward.5} parent=31 // pred_check_branch
        %355 = sbr.rel (%p353) target = $region36
      $region35: #{resnet_block_forward.5} parent=31 // pred_region
        %s356 = smul.u32 16, %s14
      $region36: #{resnet_block_forward.5} parent=31 // pred_fallthru
        _
    $region32: #{resnet_block_forward.5} parent=5 // pred_fallthru
      _
    %p357 = scmp.le.s32.totalorder 2, %s9
    // Predicated region
    $region37: #{resnet_block_forward.5} parent=5 // pred_check
      %p358 = pneg %p357
    $region38: #{resnet_block_forward.5} parent=5 // pred_check_branch
      %360 = sbr.rel (%p358) target = $region40
    $region39: #{resnet_block_forward.5} parent=5 // pred_region
      %s361 = ssub.s32 %s9, 2
      // Predicated region
      $region41: #{resnet_block_forward.5} parent=39 // pred_check
        %p362 = pneg %p106
      $region42: #{resnet_block_forward.5} parent=39 // pred_check_branch
        %364 = sbr.rel (%p362) target = $region44
      $region43: #{resnet_block_forward.5} parent=39 // pred_region
        %s365 = smul.u32 16, %s15
        %p366 = scmp.lt.s32.totalorder %s365, 63
        %s367 = scalar_select %p366, %s365, 63
        %s368 = smul.addr %s367, 4
        %s369 = scalar_lea.vmem %s3, %s368
      $region44: #{resnet_block_forward.5} parent=39 // pred_fallthru
        _
    $region40: #{resnet_block_forward.5} parent=5 // pred_fallthru
      _
  $region6: #{resnet_block_forward.5} parent=0 // loop_footer
    %s13 = sadd.s32 1, %s9
  $region7: #{resnet_block_forward.5} parent=0 // loop_footer_branch
    %8 = sbr.rel target = $region3
  $region8: #{resnet_block_forward.5} parent=0 // loop_exit
    _

// kernel: resnet_block_forward.4
$region0: #{resnet_block_forward.4}
  #allocation0 [shape = 'u32[]', space=smem, size = 0x4, offset = 0x4, fixed_abs, tag = 'smem constant byte address 0x4 - core index']
  #allocation1 [shape = 'u32[144,128]{1,0:T(1,128)}', space=vmem, size = 0x12000, scoped, tag = 'internal scratch']
  %s0 = inlined_call_operand.vmem [shape: bf16[512,1152], index: 0, kind: input, shape index: {}]
  %s1 = inlined_call_operand.vmem [shape: bf16[1152,128], index: 1, kind: input, shape index: {}]
  %s2 = inlined_call_operand.vmem [shape: bf16[512,128], index: 2, kind: output, shape index: {0}]
  %s3 = inlined_call_operand.vmem [shape: f32[4,2,128], index: 3, kind: output, shape index: {1}]
  %4 = xla_tuple %s2, %s3
  %s5 = sld [smem:[#allocation0]]
  $region49: #{resnet_block_forward.4} parent=0
    _
  %s7 = ssub.s32 1, %s5
  %s8 = scalar_select 0, %s7, %s5
  loop: start=0, step=1, limit=6
  $region2: #{resnet_block_forward.4} parent=0 // loop_pre_header
    _
  $region3: #{resnet_block_forward.4} parent=0 // loop_header
    %s10 = sphi 0, %s14
    %p11 = scmp.ge.s32.totalorder %s10, 6
    %s20 = sphi 0, %s22
    %s23 = sphi 0, %s20
    %s24 = sphi 0, %s23
    %s40 = sphi 0, %s24
    %s44 = sphi 0, %s44
    %s46 = sphi 0, %s44
    %s47 = sphi 0, %s46
    %s61 = sphi 0, %s47
    %s67 = sphi 0, %s69
    %s70 = sphi 0, %s67
    %s71 = sphi 0, %s70
    %s87 = sphi 0, %s71
    %s93 = sphi 0, %s95
    %s96 = sphi 0, %s93
    %s97 = sphi 0, %s96
    %s113 = sphi 0, %s97
  $region4: #{resnet_block_forward.4} parent=0 // loop_header_branch
    %13 = sbr.rel (%p11) target = $region8
  $region5: #{resnet_block_forward.4} parent=0 // loop_body
    %s15 = ssub.s32 %s10, 1
    %s16 = ssub.s32 %s10, 2
    %s17 = sadd.s32 %s10, 1
    %s18 = ssub.s32 %s10, %s17
    %p19 = scmp.eq.s32.totalorder %s18, 0
    %s21 = sadd.s32 %s20, 1
    %s22 = scalar_select %p19, %s20, %s21
    %p25 = pneg %p19
    %p26 = scmp.eq.s32.totalorder %s10, 3
    %p27 = por %p25, %p26
    %p28 = scmp.ne.s32.totalorder %s20, %s23
    %p29 = scmp.eq.s32.totalorder %s10, 0
    %p30 = por %p28, %p29
    %p31 = scmp.ne.s32.totalorder %s20, %s23
    %p32 = scmp.eq.s32.totalorder %s15, 3
    %p33 = por %p31, %p32
    %p34 = scmp.ne.s32.totalorder %s23, %s24
    %p35 = scmp.eq.s32.totalorder %s15, 0
    %p36 = por %p34, %p35
    %p37 = scmp.ne.s32.totalorder %s23, %s24
    %p38 = scmp.eq.s32.totalorder %s16, 3
    %p39 = por %p37, %p38
    %p41 = scmp.ne.s32.totalorder %s24, %s40
    %p42 = scmp.eq.s32.totalorder %s16, 0
    %p43 = por %p41, %p42
    %s45 = sadd.s32 %s44, 1
    %p48 = scmp.eq.s32.totalorder %s10, 3
    %p49 = scmp.ne.s32.totalorder %s44, %s46
    %p50 = scmp.eq.s32.totalorder %s10, 0
    %p51 = por %p49, %p50
    %p52 = scmp.ne.s32.totalorder %s44, %s46
    %p53 = scmp.eq.s32.totalorder %s15, 3
    %p54 = por %p52, %p53
    %p55 = scmp.ne.s32.totalorder %s46, %s47
    %p56 = scmp.eq.s32.totalorder %s15, 0
    %p57 = por %p55, %p56
    %p58 = scmp.ne.s32.totalorder %s46, %s47
    %p59 = scmp.eq.s32.totalorder %s16, 3
    %p60 = por %p58, %p59
    %p62 = scmp.ne.s32.totalorder %s47, %s61
    %p63 = scmp.eq.s32.totalorder %s16, 0
    %p64 = por %p62, %p63
    %s65 = ssub.s32 %s10, %s17
    %p66 = scmp.eq.s32.totalorder %s65, 0
    %s68 = sadd.s32 %s67, 1
    %s69 = scalar_select %p66, %s67, %s68
    %p72 = pneg %p66
    %p73 = scmp.eq.s32.totalorder %s10, 3
    %p74 = por %p72, %p73
    %p75 = scmp.ne.s32.totalorder %s67, %s70
    %p76 = scmp.eq.s32.totalorder %s10, 0
    %p77 = por %p75, %p76
    %p78 = scmp.ne.s32.totalorder %s67, %s70
    %p79 = scmp.eq.s32.totalorder %s15, 3
    %p80 = por %p78, %p79
    %p81 = scmp.ne.s32.totalorder %s70, %s71
    %p82 = scmp.eq.s32.totalorder %s15, 0
    %p83 = por %p81, %p82
    %p84 = scmp.ne.s32.totalorder %s70, %s71
    %p85 = scmp.eq.s32.totalorder %s16, 3
    %p86 = por %p84, %p85
    %p88 = scmp.ne.s32.totalorder %s71, %s87
    %p89 = scmp.eq.s32.totalorder %s16, 0
    %p90 = por %p88, %p89
    %s91 = ssub.s32 %s10, %s17
    %p92 = scmp.eq.s32.totalorder %s91, 0
    %s94 = sadd.s32 %s93, 1
    %s95 = scalar_select %p92, %s93, %s94
    %p98 = pneg %p92
    %p99 = scmp.eq.s32.totalorder %s10, 3
    %p100 = por %p98, %p99
    %p101 = scmp.ne.s32.totalorder %s93, %s96
    %p102 = scmp.eq.s32.totalorder %s10, 0
    %p103 = por %p101, %p102
    %p104 = scmp.ne.s32.totalorder %s93, %s96
    %p105 = scmp.eq.s32.totalorder %s15, 3
    %p106 = por %p104, %p105
    %p107 = scmp.ne.s32.totalorder %s96, %s97
    %p108 = scmp.eq.s32.totalorder %s15, 0
    %p109 = por %p107, %p108
    %p110 = scmp.ne.s32.totalorder %s96, %s97
    %p111 = scmp.eq.s32.totalorder %s16, 3
    %p112 = por %p110, %p111
    %p114 = scmp.ne.s32.totalorder %s97, %s113
    %p115 = scmp.eq.s32.totalorder %s16, 0
    %p116 = por %p114, %p115
    %p117 = scmp.le.s32.totalorder 1, %s10
    %p118 = scmp.lt.s32.totalorder %s10, 5
    %p119 = pnand %p117, %p118
    %p120 = pneg %p119
    // Predicated region
    $region9: #{resnet_block_forward.4} parent=5 // pred_check
      _
    $region10: #{resnet_block_forward.4} parent=5 // pred_check_branch
      %122 = sbr.rel (%p119) target = $region12
    $region11: #{resnet_block_forward.4} parent=5 // pred_region
      %s123 = ssub.s32 %s10, 1
      // Predicated region
      $region13: #{resnet_block_forward.4} parent=11 // pred_check
        %p124 = pneg %p57
      $region14: #{resnet_block_forward.4} parent=11 // pred_check_branch
        %126 = sbr.rel (%p124) target = $region16
      $region15: #{resnet_block_forward.4} parent=11 // pred_region
        _
      $region16: #{resnet_block_forward.4} parent=11 // pred_fallthru
        _
    $region12: #{resnet_block_forward.4} parent=5 // pred_fallthru
      _
    %p127 = scmp.lt.s32.totalorder %s10, 4
    // Predicated region
    $region17: #{resnet_block_forward.4} parent=5 // pred_check
      %p128 = pneg %p127
    $region18: #{resnet_block_forward.4} parent=5 // pred_check_branch
      %130 = sbr.rel (%p128) target = $region20
    $region19: #{resnet_block_forward.4} parent=5 // pred_region
      // Predicated region
      $region21: #{resnet_block_forward.4} parent=19 // pred_check
        %p131 = pneg %p30
      $region22: #{resnet_block_forward.4} parent=19 // pred_check_branch
        %133 = sbr.rel (%p131) target = $region24
      $region23: #{resnet_block_forward.4} parent=19 // pred_region
        %s134 = smul.u32 16, %s10
        %p135 = scmp.lt.s32.totalorder %s134, 63
        %s136 = scalar_select %p135, %s134, 63
        %s137 = smul.addr %s136, 9
        %s138 = smul.addr %s137, 4
        %s139 = scalar_lea.vmem %s0, %s138
        %s140 = smul.u32 16, %s10
      $region24: #{resnet_block_forward.4} parent=19 // pred_fallthru
        _
    $region20: #{resnet_block_forward.4} parent=5 // pred_fallthru
      _
    %p141 = scmp.le.s32.totalorder 1, %s10
    %p142 = scmp.lt.s32.totalorder %s10, 5
    %p143 = pnand %p141, %p142
    %p144 = pneg %p143
    // Predicated region
    $region25: #{resnet_block_forward.4} parent=5 // pred_check
      _
    $region26: #{resnet_block_forward.4} parent=5 // pred_check_branch
      %146 = sbr.rel (%p143) target = $region28
    $region27: #{resnet_block_forward.4} parent=5 // pred_region
      %s147 = ssub.s32 %s10, 1
      %s148 = smul.u32 16, %s15
      %p149 = scmp.lt.s32.totalorder %s148, 63
      %s150 = scalar_select %p149, %s148, 63
      %s151 = smul.addr %s150, 9
      %s152 = smul.addr %s151, 4
      %s153 = scalar_lea.vmem %s0, %s152
      %p154 = pneg %p36
      %p155 = pneg %p33
      %p156 = pneg %p57
      %p157 = pneg %p54
      %p158 = pneg %p83
      %p159 = pneg %p80
      %s160 = smul.u32 16, %s15
      %p161 = scmp.lt.s32.totalorder %s160, 63
      %s162 = scalar_select %p161, %s160, 63
      %s163 = smul.addr %s162, 4
      %s164 = scalar_lea.vmem %s2, %s163
      %p165 = pneg %p109
      %p166 = pneg %p106
      %p167 = scmp.lt.s32.totalorder %s15, 3
      %s168 = scalar_select %p167, %s15, 3
      %s169 = smul.addr %s168, 2
      %s170 = scalar_lea.vmem %s3, %s169
      %s171 = smul.u32 16, %s15
      %p172 = scmp.lt.s32.totalorder %s171, 63
      %s173 = scalar_select %p172, %s171, 63
      %s174 = smul.addr %s173, 9
      %s175 = smul.addr %s174, 4
      %s176 = scalar_lea.vmem %s0, %s175
      %s177 = smul.u32 16, %s15
      %s178 = smul.u32 16, %s15
      %p179 = scmp.lt.s32.totalorder %s178, 63
      %s180 = scalar_select %p179, %s178, 63
      %s181 = smul.addr %s180, 4
      %s182 = scalar_lea.vmem %s2, %s181
      %s183 = smul.u32 16, %s15
      %p184 = scmp.lt.s32.totalorder %s15, 3
      %s185 = scalar_select %p184, %s15, 3
      %s186 = smul.addr %s185, 2
      %s187 = scalar_lea.vmem %s3, %s186
      %v189 = vld [vmem:[%s176] sm:$0xff]
      %v190 = vld [vmem:[%s176 + $0x8] sm:$0xff]
      %v191 = vld [vmem:[%s176 + $0x10] sm:$0xff]
      %v192 = vld [vmem:[%s176 + $0x18] sm:$0xff]
      %v193 = vld [vmem:[%s176 + $0x20] sm:$0xf]
      %v194 = vld [vmem:[%s176 + $0x24] sm:$0xff]
      %v195 = vld [vmem:[%s176 + $0x2c] sm:$0xff]
      %v196 = vld [vmem:[%s176 + $0x34] sm:$0xff]
      %v197 = vld [vmem:[%s176 + $0x3c] sm:$0xff]
      %v198 = vld [vmem:[%s176 + $0x44] sm:$0xf]
      %v199 = vld [vmem:[%s176 + $0x48] sm:$0xff]
      %v200 = vld [vmem:[%s176 + $0x50] sm:$0xff]
      %v201 = vld [vmem:[%s176 + $0x58] sm:$0xff]
      %v202 = vld [vmem:[%s176 + $0x60] sm:$0xff]
      %v203 = vld [vmem:[%s176 + $0x68] sm:$0xf]
      %v204 = vld [vmem:[%s176 + $0x6c] sm:$0xff]
      %v205 = vld [vmem:[%s176 + $0x74] sm:$0xff]
      %v206 = vld [vmem:[%s176 + $0x7c] sm:$0xff]
      %v207 = vld [vmem:[%s176 + $0x84] sm:$0xff]
      %v208 = vld [vmem:[%s176 + $0x8c] sm:$0xf]
      %v209 = vld [vmem:[%s176 + $0x90] sm:$0xff]
      %v210 = vld [vmem:[%s176 + $0x98] sm:$0xff]
      %v211 = vld [vmem:[%s176 + $0xa0] sm:$0xff]
      %v212 = vld [vmem:[%s176 + $0xa8] sm:$0xff]
      %v213 = vld [vmem:[%s176 + $0xb0] sm:$0xf]
      %v214 = vld [vmem:[%s176 + $0xb4] sm:$0xff]
      %v215 = vld [vmem:[%s176 + $0xbc] sm:$0xff]
      %v216 = vld [vmem:[%s176 + $0xc4] sm:$0xff]
      %v217 = vld [vmem:[%s176 + $0xcc] sm:$0xff]
      %v218 = vld [vmem:[%s176 + $0xd4] sm:$0xf]
      %v219 = vld [vmem:[%s176 + $0xd8] sm:$0xff]
      %v220 = vld [vmem:[%s176 + $0xe0] sm:$0xff]
      %v221 = vld [vmem:[%s176 + $0xe8] sm:$0xff]
      %v222 = vld [vmem:[%s176 + $0xf0] sm:$0xff]
      %v223 = vld [vmem:[%s176 + $0xf8] sm:$0xf]
      %v224 = vld [vmem:[%s176 + $0xfc] sm:$0xff]
      %v225 = vld [vmem:[%s176 + $0x104] sm:$0xff]
      %v226 = vld [vmem:[%s176 + $0x10c] sm:$0xff]
      %v227 = vld [vmem:[%s176 + $0x114] sm:$0xff]
      %v228 = vld [vmem:[%s176 + $0x11c] sm:$0xf]
      %v229 = vld [vmem:[%s176 + $0x120] sm:$0xff]
      %v230 = vld [vmem:[%s176 + $0x128] sm:$0xff]
      %v231 = vld [vmem:[%s176 + $0x130] sm:$0xff]
      %v232 = vld [vmem:[%s176 + $0x138] sm:$0xff]
      %v233 = vld [vmem:[%s176 + $0x140] sm:$0xf]
      %v234 = vld [vmem:[%s176 + $0x144] sm:$0xff]
      %v235 = vld [vmem:[%s176 + $0x14c] sm:$0xff]
      %v236 = vld [vmem:[%s176 + $0x154] sm:$0xff]
      %v237 = vld [vmem:[%s176 + $0x15c] sm:$0xff]
      %v238 = vld [vmem:[%s176 + $0x164] sm:$0xf]
      %v239 = vld [vmem:[%s176 + $0x168] sm:$0xff]
      %v240 = vld [vmem:[%s176 + $0x170] sm:$0xff]
      %v241 = vld [vmem:[%s176 + $0x178] sm:$0xff]
      %v242 = vld [vmem:[%s176 + $0x180] sm:$0xff]
      %v243 = vld [vmem:[%s176 + $0x188] sm:$0xf]
      %v244 = vld [vmem:[%s176 + $0x18c] sm:$0xff]
      %v245 = vld [vmem:[%s176 + $0x194] sm:$0xff]
      %v246 = vld [vmem:[%s176 + $0x19c] sm:$0xff]
      %v247 = vld [vmem:[%s176 + $0x1a4] sm:$0xff]
      %v248 = vld [vmem:[%s176 + $0x1ac] sm:$0xf]
      %v249 = vld [vmem:[%s176 + $0x1b0] sm:$0xff]
      %v250 = vld [vmem:[%s176 + $0x1b8] sm:$0xff]
      %v251 = vld [vmem:[%s176 + $0x1c0] sm:$0xff]
      %v252 = vld [vmem:[%s176 + $0x1c8] sm:$0xff]
      %v253 = vld [vmem:[%s176 + $0x1d0] sm:$0xf]
      %v254 = vld [vmem:[%s176 + $0x1d4] sm:$0xff]
      %v255 = vld [vmem:[%s176 + $0x1dc] sm:$0xff]
      %v256 = vld [vmem:[%s176 + $0x1e4] sm:$0xff]
      %v257 = vld [vmem:[%s176 + $0x1ec] sm:$0xff]
      %v258 = vld [vmem:[%s176 + $0x1f4] sm:$0xf]
      %v259 = vld [vmem:[%s176 + $0x1f8] sm:$0xff]
      %v260 = vld [vmem:[%s176 + $0x200] sm:$0xff]
      %v261 = vld [vmem:[%s176 + $0x208] sm:$0xff]
      %v262 = vld [vmem:[%s176 + $0x210] sm:$0xff]
      %v263 = vld [vmem:[%s176 + $0x218] sm:$0xf]
      %v264 = vld [vmem:[%s176 + $0x21c] sm:$0xff]
      %v265 = vld [vmem:[%s176 + $0x224] sm:$0xff]
      %v266 = vld [vmem:[%s176 + $0x22c] sm:$0xff]
      %v267 = vld [vmem:[%s176 + $0x234] sm:$0xff]
      %v268 = vld [vmem:[%s176 + $0x23c] sm:$0xf]
      %v269 = vld [vmem:[%s1] sm:$0xf]
      %v270 = vld [vmem:[%s1 + $0x4] sm:$0xf]
      %v271 = vld [vmem:[%s1 + $0x8] sm:$0xf]
      %v272 = vld [vmem:[%s1 + $0xc] sm:$0xf]
      %v273 = vld [vmem:[%s1 + $0x10] sm:$0xf]
      %v274 = vld [vmem:[%s1 + $0x14] sm:$0xf]
      %v275 = vld [vmem:[%s1 + $0x18] sm:$0xf]
      %v276 = vld [vmem:[%s1 + $0x1c] sm:$0xf]
      %v277 = vld [vmem:[%s1 + $0x20] sm:$0xf]
      %v278 = vld [vmem:[%s1 + $0x24] sm:$0xf]
      %v279 = vld [vmem:[%s1 + $0x28] sm:$0xf]
      %v280 = vld [vmem:[%s1 + $0x2c] sm:$0xf]
      %v281 = vld [vmem:[%s1 + $0x30] sm:$0xf]
      %v282 = vld [vmem:[%s1 + $0x34] sm:$0xf]
      %v283 = vld [vmem:[%s1 + $0x38] sm:$0xf]
      %v284 = vld [vmem:[%s1 + $0x3c] sm:$0xf]
      %v285 = vld [vmem:[%s1 + $0x40] sm:$0xf]
      %v286 = vld [vmem:[%s1 + $0x44] sm:$0xf]
      %v287 = vld [vmem:[%s1 + $0x48] sm:$0xf]
      %v288 = vld [vmem:[%s1 + $0x4c] sm:$0xf]
      %v289 = vld [vmem:[%s1 + $0x50] sm:$0xf]
      %v290 = vld [vmem:[%s1 + $0x54] sm:$0xf]
      %v291 = vld [vmem:[%s1 + $0x58] sm:$0xf]
      %v292 = vld [vmem:[%s1 + $0x5c] sm:$0xf]
      %v293 = vld [vmem:[%s1 + $0x60] sm:$0xf]
      %v294 = vld [vmem:[%s1 + $0x64] sm:$0xf]
      %v295 = vld [vmem:[%s1 + $0x68] sm:$0xf]
      %v296 = vld [vmem:[%s1 + $0x6c] sm:$0xf]
      %v297 = vld [vmem:[%s1 + $0x70] sm:$0xf]
      %v298 = vld [vmem:[%s1 + $0x74] sm:$0xf]
      %v299 = vld [vmem:[%s1 + $0x78] sm:$0xf]
      %v300 = vld [vmem:[%s1 + $0x7c] sm:$0xf]
      %v301 = vld [vmem:[%s1 + $0x80] sm:$0xf]
      %v302 = vld [vmem:[%s1 + $0x84] sm:$0xf]
      %v303 = vld [vmem:[%s1 + $0x88] sm:$0xf]
      %v304 = vld [vmem:[%s1 + $0x8c] sm:$0xf]
      %v305 = vld [vmem:[%s1 + $0x90] sm:$0xf]
      %v306 = vld [vmem:[%s1 + $0x94] sm:$0xf]
      %v307 = vld [vmem:[%s1 + $0x98] sm:$0xf]
      %v308 = vld [vmem:[%s1 + $0x9c] sm:$0xf]
      %v309 = vld [vmem:[%s1 + $0xa0] sm:$0xf]
      %v310 = vld [vmem:[%s1 + $0xa4] sm:$0xf]
      %v311 = vld [vmem:[%s1 + $0xa8] sm:$0xf]
      %v312 = vld [vmem:[%s1 + $0xac] sm:$0xf]
      %v313 = vld [vmem:[%s1 + $0xb0] sm:$0xf]
      %v314 = vld [vmem:[%s1 + $0xb4] sm:$0xf]
      %v315 = vld [vmem:[%s1 + $0xb8] sm:$0xf]
      %v316 = vld [vmem:[%s1 + $0xbc] sm:$0xf]
      %v317 = vld [vmem:[%s1 + $0xc0] sm:$0xf]
      %v318 = vld [vmem:[%s1 + $0xc4] sm:$0xf]
      %v319 = vld [vmem:[%s1 + $0xc8] sm:$0xf]
      %v320 = vld [vmem:[%s1 + $0xcc] sm:$0xf]
      %v321 = vld [vmem:[%s1 + $0xd0] sm:$0xf]
      %v322 = vld [vmem:[%s1 + $0xd4] sm:$0xf]
      %v323 = vld [vmem:[%s1 + $0xd8] sm:$0xf]
      %v324 = vld [vmem:[%s1 + $0xdc] sm:$0xf]
      %v325 = vld [vmem:[%s1 + $0xe0] sm:$0xf]
      %v326 = vld [vmem:[%s1 + $0xe4] sm:$0xf]
      %v327 = vld [vmem:[%s1 + $0xe8] sm:$0xf]
      %v328 = vld [vmem:[%s1 + $0xec] sm:$0xf]
      %v329 = vld [vmem:[%s1 + $0xf0] sm:$0xf]
      %v330 = vld [vmem:[%s1 + $0xf4] sm:$0xf]
      %v331 = vld [vmem:[%s1 + $0xf8] sm:$0xf]
      %v332 = vld [vmem:[%s1 + $0xfc] sm:$0xf]
      %v333 = vld [vmem:[%s1 + $0x100] sm:$0xf]
      %v334 = vld [vmem:[%s1 + $0x104] sm:$0xf]
      %v335 = vld [vmem:[%s1 + $0x108] sm:$0xf]
      %v336 = vld [vmem:[%s1 + $0x10c] sm:$0xf]
      %v337 = vld [vmem:[%s1 + $0x110] sm:$0xf]
      %v338 = vld [vmem:[%s1 + $0x114] sm:$0xf]
      %v339 = vld [vmem:[%s1 + $0x118] sm:$0xf]
      %v340 = vld [vmem:[%s1 + $0x11c] sm:$0xf]
      %v341 = vld [vmem:[%s1 + $0x120] sm:$0xf]
      %v342 = vld [vmem:[%s1 + $0x124] sm:$0xf]
      %v343 = vld [vmem:[%s1 + $0x128] sm:$0xf]
      %v344 = vld [vmem:[%s1 + $0x12c] sm:$0xf]
      %v345 = vld [vmem:[%s1 + $0x130] sm:$0xf]
      %v346 = vld [vmem:[%s1 + $0x134] sm:$0xf]
      %v347 = vld [vmem:[%s1 + $0x138] sm:$0xf]
      %v348 = vld [vmem:[%s1 + $0x13c] sm:$0xf]
      %v349 = vld [vmem:[%s1 + $0x140] sm:$0xf]
      %v350 = vld [vmem:[%s1 + $0x144] sm:$0xf]
      %v351 = vld [vmem:[%s1 + $0x148] sm:$0xf]
      %v352 = vld [vmem:[%s1 + $0x14c] sm:$0xf]
      %v353 = vld [vmem:[%s1 + $0x150] sm:$0xf]
      %v354 = vld [vmem:[%s1 + $0x154] sm:$0xf]
      %v355 = vld [vmem:[%s1 + $0x158] sm:$0xf]
      %v356 = vld [vmem:[%s1 + $0x15c] sm:$0xf]
      %v357 = vld [vmem:[%s1 + $0x160] sm:$0xf]
      %v358 = vld [vmem:[%s1 + $0x164] sm:$0xf]
      %v359 = vld [vmem:[%s1 + $0x168] sm:$0xf]
      %v360 = vld [vmem:[%s1 + $0x16c] sm:$0xf]
      %v361 = vld [vmem:[%s1 + $0x170] sm:$0xf]
      %v362 = vld [vmem:[%s1 + $0x174] sm:$0xf]
      %v363 = vld [vmem:[%s1 + $0x178] sm:$0xf]
      %v364 = vld [vmem:[%s1 + $0x17c] sm:$0xf]
      %v365 = vld [vmem:[%s1 + $0x180] sm:$0xf]
      %v366 = vld [vmem:[%s1 + $0x184] sm:$0xf]
      %v367 = vld [vmem:[%s1 + $0x188] sm:$0xf]
      %v368 = vld [vmem:[%s1 + $0x18c] sm:$0xf]
      %v369 = vld [vmem:[%s1 + $0x190] sm:$0xf]
      %v370 = vld [vmem:[%s1 + $0x194] sm:$0xf]
      %v371 = vld [vmem:[%s1 + $0x198] sm:$0xf]
      %v372 = vld [vmem:[%s1 + $0x19c] sm:$0xf]
      %v373 = vld [vmem:[%s1 + $0x1a0] sm:$0xf]
      %v374 = vld [vmem:[%s1 + $0x1a4] sm:$0xf]
      %v375 = vld [vmem:[%s1 + $0x1a8] sm:$0xf]
      %v376 = vld [vmem:[%s1 + $0x1ac] sm:$0xf]
      %v377 = vld [vmem:[%s1 + $0x1b0] sm:$0xf]
      %v378 = vld [vmem:[%s1 + $0x1b4] sm:$0xf]
      %v379 = vld [vmem:[%s1 + $0x1b8] sm:$0xf]
      %v380 = vld [vmem:[%s1 + $0x1bc] sm:$0xf]
      %v381 = vld [vmem:[%s1 + $0x1c0] sm:$0xf]
      %v382 = vld [vmem:[%s1 + $0x1c4] sm:$0xf]
      %v383 = vld [vmem:[%s1 + $0x1c8] sm:$0xf]
      %v384 = vld [vmem:[%s1 + $0x1cc] sm:$0xf]
      %v385 = vld [vmem:[%s1 + $0x1d0] sm:$0xf]
      %v386 = vld [vmem:[%s1 + $0x1d4] sm:$0xf]
      %v387 = vld [vmem:[%s1 + $0x1d8] sm:$0xf]
      %v388 = vld [vmem:[%s1 + $0x1dc] sm:$0xf]
      %v389 = vld [vmem:[%s1 + $0x1e0] sm:$0xf]
      %v390 = vld [vmem:[%s1 + $0x1e4] sm:$0xf]
      %v391 = vld [vmem:[%s1 + $0x1e8] sm:$0xf]
      %v392 = vld [vmem:[%s1 + $0x1ec] sm:$0xf]
      %v393 = vld [vmem:[%s1 + $0x1f0] sm:$0xf]
      %v394 = vld [vmem:[%s1 + $0x1f4] sm:$0xf]
      %v395 = vld [vmem:[%s1 + $0x1f8] sm:$0xf]
      %v396 = vld [vmem:[%s1 + $0x1fc] sm:$0xf]
      %v397 = vld [vmem:[%s1 + $0x200] sm:$0xf]
      %v398 = vld [vmem:[%s1 + $0x204] sm:$0xf]
      %v399 = vld [vmem:[%s1 + $0x208] sm:$0xf]
      %v400 = vld [vmem:[%s1 + $0x20c] sm:$0xf]
      %v401 = vld [vmem:[%s1 + $0x210] sm:$0xf]
      %v402 = vld [vmem:[%s1 + $0x214] sm:$0xf]
      %v403 = vld [vmem:[%s1 + $0x218] sm:$0xf]
      %v404 = vld [vmem:[%s1 + $0x21c] sm:$0xf]
      %v405 = vld [vmem:[%s1 + $0x220] sm:$0xf]
      %v406 = vld [vmem:[%s1 + $0x224] sm:$0xf]
      %v407 = vld [vmem:[%s1 + $0x228] sm:$0xf]
      %v408 = vld [vmem:[%s1 + $0x22c] sm:$0xf]
      %v409 = vld [vmem:[%s1 + $0x230] sm:$0xf]
      %v410 = vld [vmem:[%s1 + $0x234] sm:$0xf]
      %v411 = vld [vmem:[%s1 + $0x238] sm:$0xf]
      %v412 = vld [vmem:[%s1 + $0x23c] sm:$0xf]
      %v493 = vunpack.c.l.b16 %v189
      %v494 = vunpack.c.h.b16 %v189
      %v495 = vunpack.c.l.b16 %v190
      %v496 = vunpack.c.h.b16 %v190
      %v497 = vunpack.c.l.b16 %v191
      %v498 = vunpack.c.h.b16 %v191
      %v499 = vunpack.c.l.b16 %v192
      %v500 = vunpack.c.h.b16 %v192
      %v501 = vunpack.c.l.b16 %v193
      %v502 = vunpack.c.l.b16 %v194
      %v503 = vunpack.c.h.b16 %v194
      %v504 = vunpack.c.l.b16 %v195
      %v505 = vunpack.c.h.b16 %v195
      %v506 = vunpack.c.l.b16 %v196
      %v507 = vunpack.c.h.b16 %v196
      %v508 = vunpack.c.l.b16 %v197
      %v509 = vunpack.c.h.b16 %v197
      %v510 = vunpack.c.l.b16 %v198
      %v511 = vunpack.c.l.b16 %v199
      %v512 = vunpack.c.h.b16 %v199
      %v513 = vunpack.c.l.b16 %v200
      %v514 = vunpack.c.h.b16 %v200
      %v515 = vunpack.c.l.b16 %v201
      %v516 = vunpack.c.h.b16 %v201
      %v517 = vunpack.c.l.b16 %v202
      %v518 = vunpack.c.h.b16 %v202
      %v519 = vunpack.c.l.b16 %v203
      %v520 = vunpack.c.l.b16 %v204
      %v521 = vunpack.c.h.b16 %v204
      %v522 = vunpack.c.l.b16 %v205
      %v523 = vunpack.c.h.b16 %v205
      %v524 = vunpack.c.l.b16 %v206
      %v525 = vunpack.c.h.b16 %v206
      %v526 = vunpack.c.l.b16 %v207
      %v527 = vunpack.c.h.b16 %v207
      %v528 = vunpack.c.l.b16 %v208
      %v529 = vunpack.c.l.b16 %v209
      %v530 = vunpack.c.h.b16 %v209
      %v531 = vunpack.c.l.b16 %v210
      %v532 = vunpack.c.h.b16 %v210
      %v533 = vunpack.c.l.b16 %v211
      %v534 = vunpack.c.h.b16 %v211
      %v535 = vunpack.c.l.b16 %v212
      %v536 = vunpack.c.h.b16 %v212
      %v537 = vunpack.c.l.b16 %v213
      %v538 = vunpack.c.l.b16 %v214
      %v539 = vunpack.c.h.b16 %v214
      %v540 = vunpack.c.l.b16 %v215
      %v541 = vunpack.c.h.b16 %v215
      %v542 = vunpack.c.l.b16 %v216
      %v543 = vunpack.c.h.b16 %v216
      %v544 = vunpack.c.l.b16 %v217
      %v545 = vunpack.c.h.b16 %v217
      %v546 = vunpack.c.l.b16 %v218
      %v547 = vunpack.c.l.b16 %v219
      %v548 = vunpack.c.h.b16 %v219
      %v549 = vunpack.c.l.b16 %v220
      %v550 = vunpack.c.h.b16 %v220
      %v551 = vunpack.c.l.b16 %v221
      %v552 = vunpack.c.h.b16 %v221
      %v553 = vunpack.c.l.b16 %v222
      %v554 = vunpack.c.h.b16 %v222
      %v555 = vunpack.c.l.b16 %v223
      %v556 = vunpack.c.l.b16 %v224
      %v557 = vunpack.c.h.b16 %v224
      %v558 = vunpack.c.l.b16 %v225
      %v559 = vunpack.c.h.b16 %v225
      %v560 = vunpack.c.l.b16 %v226
      %v561 = vunpack.c.h.b16 %v226
      %v562 = vunpack.c.l.b16 %v227
      %v563 = vunpack.c.h.b16 %v227
      %v564 = vunpack.c.l.b16 %v228
      %v565 = vunpack.c.l.b16 %v229
      %v566 = vunpack.c.h.b16 %v229
      %v567 = vunpack.c.l.b16 %v230
      %v568 = vunpack.c.h.b16 %v230
      %v569 = vunpack.c.l.b16 %v231
      %v570 = vunpack.c.h.b16 %v231
      %v571 = vunpack.c.l.b16 %v232
      %v572 = vunpack.c.h.b16 %v232
      %v573 = vunpack.c.l.b16 %v233
      %v574 = vunpack.c.l.b16 %v234
      %v575 = vunpack.c.h.b16 %v234
      %v576 = vunpack.c.l.b16 %v235
      %v577 = vunpack.c.h.b16 %v235
      %v578 = vunpack.c.l.b16 %v236
      %v579 = vunpack.c.h.b16 %v236
      %v580 = vunpack.c.l.b16 %v237
      %v581 = vunpack.c.h.b16 %v237
      %v582 = vunpack.c.l.b16 %v238
      %v583 = vunpack.c.l.b16 %v239
      %v584 = vunpack.c.h.b16 %v239
      %v585 = vunpack.c.l.b16 %v240
      %v586 = vunpack.c.h.b16 %v240
      %v587 = vunpack.c.l.b16 %v241
      %v588 = vunpack.c.h.b16 %v241
      %v589 = vunpack.c.l.b16 %v242
      %v590 = vunpack.c.h.b16 %v242
      %v591 = vunpack.c.l.b16 %v243
      %v592 = vunpack.c.l.b16 %v244
      %v593 = vunpack.c.h.b16 %v244
      %v594 = vunpack.c.l.b16 %v245
      %v595 = vunpack.c.h.b16 %v245
      %v596 = vunpack.c.l.b16 %v246
      %v597 = vunpack.c.h.b16 %v246
      %v598 = vunpack.c.l.b16 %v247
      %v599 = vunpack.c.h.b16 %v247
      %v600 = vunpack.c.l.b16 %v248
      %v601 = vunpack.c.l.b16 %v249
      %v602 = vunpack.c.h.b16 %v249
      %v603 = vunpack.c.l.b16 %v250
      %v604 = vunpack.c.h.b16 %v250
      %v605 = vunpack.c.l.b16 %v251
      %v606 = vunpack.c.h.b16 %v251
      %v607 = vunpack.c.l.b16 %v252
      %v608 = vunpack.c.h.b16 %v252
      %v609 = vunpack.c.l.b16 %v253
      %v610 = vunpack.c.l.b16 %v254
      %v611 = vunpack.c.h.b16 %v254
      %v612 = vunpack.c.l.b16 %v255
      %v613 = vunpack.c.h.b16 %v255
      %v614 = vunpack.c.l.b16 %v256
      %v615 = vunpack.c.h.b16 %v256
      %v616 = vunpack.c.l.b16 %v257
      %v617 = vunpack.c.h.b16 %v257
      %v618 = vunpack.c.l.b16 %v258
      %v619 = vunpack.c.l.b16 %v259
      %v620 = vunpack.c.h.b16 %v259
      %v621 = vunpack.c.l.b16 %v260
      %v622 = vunpack.c.h.b16 %v260
      %v623 = vunpack.c.l.b16 %v261
      %v624 = vunpack.c.h.b16 %v261
      %v625 = vunpack.c.l.b16 %v262
      %v626 = vunpack.c.h.b16 %v262
      %v627 = vunpack.c.l.b16 %v263
      %v628 = vunpack.c.l.b16 %v264
      %v629 = vunpack.c.h.b16 %v264
      %v630 = vunpack.c.l.b16 %v265
      %v631 = vunpack.c.h.b16 %v265
      %v632 = vunpack.c.l.b16 %v266
      %v633 = vunpack.c.h.b16 %v266
      %v634 = vunpack.c.l.b16 %v267
      %v635 = vunpack.c.h.b16 %v267
      %v636 = vunpack.c.l.b16 %v268
      %v637 = vpack.c.b16 %v502, %v493
      %v638 = vpack.c.b16 %v503, %v494
      %v639 = vpack.c.b16 %v504, %v495
      %v640 = vpack.c.b16 %v505, %v496
      %v641 = vpack.c.b16 %v506, %v497
      %v642 = vpack.c.b16 %v507, %v498
      %v643 = vpack.c.b16 %v508, %v499
      %v644 = vpack.c.b16 %v509, %v500
      %v645 = vpack.c.b16 %v510, %v501
      %v646 = vpack.c.b16 %v520, %v511
      %v647 = vpack.c.b16 %v521, %v512
      %v648 = vpack.c.b16 %v522, %v513
      %v649 = vpack.c.b16 %v523, %v514
      %v650 = vpack.c.b16 %v524, %v515
      %v651 = vpack.c.b16 %v525, %v516
      %v652 = vpack.c.b16 %v526, %v517
      %v653 = vpack.c.b16 %v527, %v518
      %v654 = vpack.c.b16 %v528, %v519
      %v655 = vpack.c.b16 %v538, %v529
      %v656 = vpack.c.b16 %v539, %v530
      %v657 = vpack.c.b16 %v540, %v531
      %v658 = vpack.c.b16 %v541, %v532
      %v659 = vpack.c.b16 %v542, %v533
      %v660 = vpack.c.b16 %v543, %v534
      %v661 = vpack.c.b16 %v544, %v535
      %v662 = vpack.c.b16 %v545, %v536
      %v663 = vpack.c.b16 %v546, %v537
      %v664 = vpack.c.b16 %v556, %v547
      %v665 = vpack.c.b16 %v557, %v548
      %v666 = vpack.c.b16 %v558, %v549
      %v667 = vpack.c.b16 %v559, %v550
      %v668 = vpack.c.b16 %v560, %v551
      %v669 = vpack.c.b16 %v561, %v552
      %v670 = vpack.c.b16 %v562, %v553
      %v671 = vpack.c.b16 %v563, %v554
      %v672 = vpack.c.b16 %v564, %v555
      %v673 = vpack.c.b16 %v574, %v565
      %v674 = vpack.c.b16 %v575, %v566
      %v675 = vpack.c.b16 %v576, %v567
      %v676 = vpack.c.b16 %v577, %v568
      %v677 = vpack.c.b16 %v578, %v569
      %v678 = vpack.c.b16 %v579, %v570
      %v679 = vpack.c.b16 %v580, %v571
      %v680 = vpack.c.b16 %v581, %v572
      %v681 = vpack.c.b16 %v582, %v573
      %v682 = vpack.c.b16 %v592, %v583
      %v683 = vpack.c.b16 %v593, %v584
      %v684 = vpack.c.b16 %v594, %v585
      %v685 = vpack.c.b16 %v595, %v586
      %v686 = vpack.c.b16 %v596, %v587
      %v687 = vpack.c.b16 %v597, %v588
      %v688 = vpack.c.b16 %v598, %v589
      %v689 = vpack.c.b16 %v599, %v590
      %v690 = vpack.c.b16 %v600, %v591
      %v691 = vpack.c.b16 %v610, %v601
      %v692 = vpack.c.b16 %v611, %v602
      %v693 = vpack.c.b16 %v612, %v603
      %v694 = vpack.c.b16 %v613, %v604
      %v695 = vpack.c.b16 %v614, %v605
      %v696 = vpack.c.b16 %v615, %v606
      %v697 = vpack.c.b16 %v616, %v607
      %v698 = vpack.c.b16 %v617, %v608
      %v699 = vpack.c.b16 %v618, %v609
      %v700 = vpack.c.b16 %v628, %v619
      %v701 = vpack.c.b16 %v629, %v620
      %v702 = vpack.c.b16 %v630, %v621
      %v703 = vpack.c.b16 %v631, %v622
      %v704 = vpack.c.b16 %v632, %v623
      %v705 = vpack.c.b16 %v633, %v624
      %v706 = vpack.c.b16 %v634, %v625
      %v707 = vpack.c.b16 %v635, %v626
      %v708 = vpack.c.b16 %v636, %v627
      %v925 = vunpack.c.l.b16 %v269
      %v926 = vunpack.c.l.b16 %v270
      %v927 = vunpack.c.l.b16 %v271
      %v928 = vunpack.c.l.b16 %v272
      %v929 = vunpack.c.l.b16 %v273
      %v930 = vunpack.c.l.b16 %v274
      %v931 = vunpack.c.l.b16 %v275
      %v932 = vunpack.c.l.b16 %v276
      %v933 = vunpack.c.l.b16 %v277
      %v934 = vunpack.c.l.b16 %v278
      %v935 = vunpack.c.l.b16 %v279
      %v936 = vunpack.c.l.b16 %v280
      %v937 = vunpack.c.l.b16 %v281
      %v938 = vunpack.c.l.b16 %v282
      %v939 = vunpack.c.l.b16 %v283
      %v940 = vunpack.c.l.b16 %v284
      %v941 = vunpack.c.l.b16 %v285
      %v942 = vunpack.c.l.b16 %v286
      %v943 = vunpack.c.l.b16 %v287
      %v944 = vunpack.c.l.b16 %v288
      %v945 = vunpack.c.l.b16 %v289
      %v946 = vunpack.c.l.b16 %v290
      %v947 = vunpack.c.l.b16 %v291
      %v948 = vunpack.c.l.b16 %v292
      %v949 = vunpack.c.l.b16 %v293
      %v950 = vunpack.c.l.b16 %v294
      %v951 = vunpack.c.l.b16 %v295
      %v952 = vunpack.c.l.b16 %v296
      %v953 = vunpack.c.l.b16 %v297
      %v954 = vunpack.c.l.b16 %v298
      %v955 = vunpack.c.l.b16 %v299
      %v956 = vunpack.c.l.b16 %v300
      %v957 = vunpack.c.l.b16 %v301
      %v958 = vunpack.c.l.b16 %v302
      %v959 = vunpack.c.l.b16 %v303
      %v960 = vunpack.c.l.b16 %v304
      %v961 = vunpack.c.l.b16 %v305
      %v962 = vunpack.c.l.b16 %v306
      %v963 = vunpack.c.l.b16 %v307
      %v964 = vunpack.c.l.b16 %v308
      %v965 = vunpack.c.l.b16 %v309
      %v966 = vunpack.c.l.b16 %v310
      %v967 = vunpack.c.l.b16 %v311
      %v968 = vunpack.c.l.b16 %v312
      %v969 = vunpack.c.l.b16 %v313
      %v970 = vunpack.c.l.b16 %v314
      %v971 = vunpack.c.l.b16 %v315
      %v972 = vunpack.c.l.b16 %v316
      %v973 = vunpack.c.l.b16 %v317
      %v974 = vunpack.c.l.b16 %v318
      %v975 = vunpack.c.l.b16 %v319
      %v976 = vunpack.c.l.b16 %v320
      %v977 = vunpack.c.l.b16 %v321
      %v978 = vunpack.c.l.b16 %v322
      %v979 = vunpack.c.l.b16 %v323
      %v980 = vunpack.c.l.b16 %v324
      %v981 = vunpack.c.l.b16 %v325
      %v982 = vunpack.c.l.b16 %v326
      %v983 = vunpack.c.l.b16 %v327
      %v984 = vunpack.c.l.b16 %v328
      %v985 = vunpack.c.l.b16 %v329
      %v986 = vunpack.c.l.b16 %v330
      %v987 = vunpack.c.l.b16 %v331
      %v988 = vunpack.c.l.b16 %v332
      %v989 = vunpack.c.l.b16 %v333
      %v990 = vunpack.c.l.b16 %v334
      %v991 = vunpack.c.l.b16 %v335
      %v992 = vunpack.c.l.b16 %v336
      %v993 = vunpack.c.l.b16 %v337
      %v994 = vunpack.c.l.b16 %v338
      %v995 = vunpack.c.l.b16 %v339
      %v996 = vunpack.c.l.b16 %v340
      %v997 = vunpack.c.l.b16 %v341
      %v998 = vunpack.c.l.b16 %v342
      %v999 = vunpack.c.l.b16 %v343
      %v1000 = vunpack.c.l.b16 %v344
      %v1001 = vunpack.c.l.b16 %v345
      %v1002 = vunpack.c.l.b16 %v346
      %v1003 = vunpack.c.l.b16 %v347
      %v1004 = vunpack.c.l.b16 %v348
      %v1005 = vunpack.c.l.b16 %v349
      %v1006 = vunpack.c.l.b16 %v350
      %v1007 = vunpack.c.l.b16 %v351
      %v1008 = vunpack.c.l.b16 %v352
      %v1009 = vunpack.c.l.b16 %v353
      %v1010 = vunpack.c.l.b16 %v354
      %v1011 = vunpack.c.l.b16 %v355
      %v1012 = vunpack.c.l.b16 %v356
      %v1013 = vunpack.c.l.b16 %v357
      %v1014 = vunpack.c.l.b16 %v358
      %v1015 = vunpack.c.l.b16 %v359
      %v1016 = vunpack.c.l.b16 %v360
      %v1017 = vunpack.c.l.b16 %v361
      %v1018 = vunpack.c.l.b16 %v362
      %v1019 = vunpack.c.l.b16 %v363
      %v1020 = vunpack.c.l.b16 %v364
      %v1021 = vunpack.c.l.b16 %v365
      %v1022 = vunpack.c.l.b16 %v366
      %v1023 = vunpack.c.l.b16 %v367
      %v1024 = vunpack.c.l.b16 %v368
      %v1025 = vunpack.c.l.b16 %v369
      %v1026 = vunpack.c.l.b16 %v370
      %v1027 = vunpack.c.l.b16 %v371
      %v1028 = vunpack.c.l.b16 %v372
      %v1029 = vunpack.c.l.b16 %v373
      %v1030 = vunpack.c.l.b16 %v374
      %v1031 = vunpack.c.l.b16 %v375
      %v1032 = vunpack.c.l.b16 %v376
      %v1033 = vunpack.c.l.b16 %v377
      %v1034 = vunpack.c.l.b16 %v378
      %v1035 = vunpack.c.l.b16 %v379
      %v1036 = vunpack.c.l.b16 %v380
      %v1037 = vunpack.c.l.b16 %v381
      %v1038 = vunpack.c.l.b16 %v382
      %v1039 = vunpack.c.l.b16 %v383
      %v1040 = vunpack.c.l.b16 %v384
      %v1041 = vunpack.c.l.b16 %v385
      %v1042 = vunpack.c.l.b16 %v386
      %v1043 = vunpack.c.l.b16 %v387
      %v1044 = vunpack.c.l.b16 %v388
      %v1045 = vunpack.c.l.b16 %v389
      %v1046 = vunpack.c.l.b16 %v390
      %v1047 = vunpack.c.l.b16 %v391
      %v1048 = vunpack.c.l.b16 %v392
      %v1049 = vunpack.c.l.b16 %v393
      %v1050 = vunpack.c.l.b16 %v394
      %v1051 = vunpack.c.l.b16 %v395
      %v1052 = vunpack.c.l.b16 %v396
      %v1053 = vunpack.c.l.b16 %v397
      %v1054 = vunpack.c.l.b16 %v398
      %v1055 = vunpack.c.l.b16 %v399
      %v1056 = vunpack.c.l.b16 %v400
      %v1057 = vunpack.c.l.b16 %v401
      %v1058 = vunpack.c.l.b16 %v402
      %v1059 = vunpack.c.l.b16 %v403
      %v1060 = vunpack.c.l.b16 %v404
      %v1061 = vunpack.c.l.b16 %v405
      %v1062 = vunpack.c.l.b16 %v406
      %v1063 = vunpack.c.l.b16 %v407
      %v1064 = vunpack.c.l.b16 %v408
      %v1065 = vunpack.c.l.b16 %v409
      %v1066 = vunpack.c.l.b16 %v410
      %v1067 = vunpack.c.l.b16 %v411
      %v1068 = vunpack.c.l.b16 %v412
      %v1069 = vpack.c.b16 %v926, %v925
      %v1070 = vpack.c.b16 %v928, %v927
      %v1071 = vpack.c.b16 %v930, %v929
      %v1072 = vpack.c.b16 %v932, %v931
      %v1073 = vpack.c.b16 %v934, %v933
      %v1074 = vpack.c.b16 %v936, %v935
      %v1075 = vpack.c.b16 %v938, %v937
      %v1076 = vpack.c.b16 %v940, %v939
      %v1077 = vpack.c.b16 %v942, %v941
      %v1078 = vpack.c.b16 %v944, %v943
      %v1079 = vpack.c.b16 %v946, %v945
      %v1080 = vpack.c.b16 %v948, %v947
      %v1081 = vpack.c.b16 %v950, %v949
      %v1082 = vpack.c.b16 %v952, %v951
      %v1083 = vpack.c.b16 %v954, %v953
      %v1084 = vpack.c.b16 %v956, %v955
      %v1085 = vpack.c.b16 %v958, %v957
      %v1086 = vpack.c.b16 %v960, %v959
      %v1087 = vpack.c.b16 %v962, %v961
      %v1088 = vpack.c.b16 %v964, %v963
      %v1089 = vpack.c.b16 %v966, %v965
      %v1090 = vpack.c.b16 %v968, %v967
      %v1091 = vpack.c.b16 %v970, %v969
      %v1092 = vpack.c.b16 %v972, %v971
      %v1093 = vpack.c.b16 %v974, %v973
      %v1094 = vpack.c.b16 %v976, %v975
      %v1095 = vpack.c.b16 %v978, %v977
      %v1096 = vpack.c.b16 %v980, %v979
      %v1097 = vpack.c.b16 %v982, %v981
      %v1098 = vpack.c.b16 %v984, %v983
      %v1099 = vpack.c.b16 %v986, %v985
      %v1100 = vpack.c.b16 %v988, %v987
      %v1101 = vpack.c.b16 %v990, %v989
      %v1102 = vpack.c.b16 %v992, %v991
      %v1103 = vpack.c.b16 %v994, %v993
      %v1104 = vpack.c.b16 %v996, %v995
      %v1105 = vpack.c.b16 %v998, %v997
      %v1106 = vpack.c.b16 %v1000, %v999
      %v1107 = vpack.c.b16 %v1002, %v1001
      %v1108 = vpack.c.b16 %v1004, %v1003
      %v1109 = vpack.c.b16 %v1006, %v1005
      %v1110 = vpack.c.b16 %v1008, %v1007
      %v1111 = vpack.c.b16 %v1010, %v1009
      %v1112 = vpack.c.b16 %v1012, %v1011
      %v1113 = vpack.c.b16 %v1014, %v1013
      %v1114 = vpack.c.b16 %v1016, %v1015
      %v1115 = vpack.c.b16 %v1018, %v1017
      %v1116 = vpack.c.b16 %v1020, %v1019
      %v1117 = vpack.c.b16 %v1022, %v1021
      %v1118 = vpack.c.b16 %v1024, %v1023
      %v1119 = vpack.c.b16 %v1026, %v1025
      %v1120 = vpack.c.b16 %v1028, %v1027
      %v1121 = vpack.c.b16 %v1030, %v1029
      %v1122 = vpack.c.b16 %v1032, %v1031
      %v1123 = vpack.c.b16 %v1034, %v1033
      %v1124 = vpack.c.b16 %v1036, %v1035
      %v1125 = vpack.c.b16 %v1038, %v1037
      %v1126 = vpack.c.b16 %v1040, %v1039
      %v1127 = vpack.c.b16 %v1042, %v1041
      %v1128 = vpack.c.b16 %v1044, %v1043
      %v1129 = vpack.c.b16 %v1046, %v1045
      %v1130 = vpack.c.b16 %v1048, %v1047
      %v1131 = vpack.c.b16 %v1050, %v1049
      %v1132 = vpack.c.b16 %v1052, %v1051
      %v1133 = vpack.c.b16 %v1054, %v1053
      %v1134 = vpack.c.b16 %v1056, %v1055
      %v1135 = vpack.c.b16 %v1058, %v1057
      %v1136 = vpack.c.b16 %v1060, %v1059
      %v1137 = vpack.c.b16 %v1062, %v1061
      %v1138 = vpack.c.b16 %v1064, %v1063
      %v1139 = vpack.c.b16 %v1066, %v1065
      %v1140 = vpack.c.b16 %v1068, %v1067
      %1213 = vmatprep.subr.bf16.mxu0 0
      %1214 = vmatpush1.bf16.msra.mxu0 %v1069
      %1215 = vmatprep.subr.bf16.mxu0 0
      %1216 = vmatpush1.bf16.msra.mxu0 %v1070
      %1217 = vmatprep.subr.bf16.mxu0 0
      %1218 = vmatpush1.bf16.msra.mxu0 %v1071
      %1219 = vmatprep.subr.bf16.mxu0 0
      %1220 = vmatpush1.bf16.msra.mxu0 %v1072
      %1221 = vmatprep.subr.bf16.mxu0 0
      %1222 = vmatpush1.bf16.msra.mxu0 %v1073
      %1223 = vmatprep.subr.bf16.mxu0 0
      %1224 = vmatpush1.bf16.msra.mxu0 %v1074
      %1225 = vmatprep.subr.bf16.mxu0 0
      %1226 = vmatpush1.bf16.msra.mxu0 %v1075
      %1227 = vmatprep.subr.bf16.mxu0 0
      %1228 = vmatpush1.bf16.msra.mxu0 %v1076
      %1229 = vmatprep.subr.bf16.mxu0 0
      %1230 = vmatpush1.bf16.msra.mxu0 %v1077
      %1231 = vmatprep.subr.bf16.mxu0 0
      %1232 = vmatpush1.bf16.msra.mxu0 %v1078
      %1233 = vmatprep.subr.bf16.mxu0 0
      %1234 = vmatpush1.bf16.msra.mxu0 %v1079
      %1235 = vmatprep.subr.bf16.mxu0 0
      %1236 = vmatpush1.bf16.msra.mxu0 %v1080
      %1237 = vmatprep.subr.bf16.mxu0 0
      %1238 = vmatpush1.bf16.msra.mxu0 %v1081
      %1239 = vmatprep.subr.bf16.mxu0 0
      %1240 = vmatpush1.bf16.msra.mxu0 %v1082
      %1241 = vmatprep.subr.bf16.mxu0 0
      %1242 = vmatpush1.bf16.msra.mxu0 %v1083
      %1243 = vmatprep.subr.bf16.mxu0 0
      %1244 = vmatpush1.bf16.msra.mxu0 %v1084
      %1245 = vmatprep.mubr.bf16.mxu0 %v638
      %1246 = vmatmul.mubr.bf16.gmra.mrb[0].mxu0 %v637
      %v1247 = vpop.f32.mrb[0].mxu0
      %v1248 = vadd.f32 0.0, %v1247
      %v1249 = vpop.f32.mrb[0].mxu0
      %v1250 = vpop.f32.mrb[0].mxu0
      %v1251 = vadd.f32 0.0, %v1250
      %v1252 = vpop.f32.mrb[0].mxu0
      %1253 = vmatprep.mubr.bf16.mxu0 %v647
      %1254 = vmatmul.mubr.bf16.gmra.mrb[0].mxu0 %v646
      %v1255 = vpop.f32.mrb[0].mxu0
      %v1256 = vadd.f32 0.0, %v1255
      %v1257 = vpop.f32.mrb[0].mxu0
      %v1258 = vpop.f32.mrb[0].mxu0
      %v1259 = vadd.f32 0.0, %v1258
      %v1260 = vpop.f32.mrb[0].mxu0
      %1261 = vmatprep.mubr.bf16.mxu0 %v656
      %1262 = vmatmul.mubr.bf16.gmra.mrb[0].mxu0 %v655
      %v1263 = vpop.f32.mrb[0].mxu0
      %v1264 = vadd.f32 0.0, %v1263
      %v1265 = vpop.f32.mrb[0].mxu0
      %v1266 = vpop.f32.mrb[0].mxu0
      %v1267 = vadd.f32 0.0, %v1266
      %v1268 = vpop.f32.mrb[0].mxu0
      %1269 = vmatprep.mubr.bf16.mxu0 %v665
      %1270 = vmatmul.mubr.bf16.gmra.mrb[0].mxu0 %v664
      %v1271 = vpop.f32.mrb[0].mxu0
      %v1272 = vadd.f32 0.0, %v1271
      %v1273 = vpop.f32.mrb[0].mxu0
      %v1274 = vpop.f32.mrb[0].mxu0
      %v1275 = vadd.f32 0.0, %v1274
      %v1276 = vpop.f32.mrb[0].mxu0
      %1277 = vmatprep.mubr.bf16.mxu0 %v674
      %1278 = vmatmul.mubr.bf16.gmra.mrb[0].mxu0 %v673
      %v1279 = vpop.f32.mrb[0].mxu0
      %v1280 = vadd.f32 0.0, %v1279
      %v1281 = vpop.f32.mrb[0].mxu0
      %v1282 = vpop.f32.mrb[0].mxu0
      %v1283 = vadd.f32 0.0, %v1282
      %v1284 = vpop.f32.mrb[0].mxu0
      %1285 = vmatprep.mubr.bf16.mxu0 %v683
      %1286 = vmatmul.mubr.bf16.gmra.mrb[0].mxu0 %v682
      %v1287 = vpop.f32.mrb[0].mxu0
      %v1288 = vadd.f32 0.0, %v1287
      %v1289 = vpop.f32.mrb[0].mxu0
      %v1290 = vpop.f32.mrb[0].mxu0
      %v1291 = vadd.f32 0.0, %v1290
      %v1292 = vpop.f32.mrb[0].mxu0
      %1293 = vmatprep.mubr.bf16.mxu0 %v692
      %1294 = vmatmul.mubr.bf16.gmra.mrb[0].mxu0 %v691
      %v1295 = vpop.f32.mrb[0].mxu0
      %v1296 = vadd.f32 0.0, %v1295
      %v1297 = vpop.f32.mrb[0].mxu0
      %v1298 = vpop.f32.mrb[0].mxu0
      %v1299 = vadd.f32 0.0, %v1298
      %v1300 = vpop.f32.mrb[0].mxu0
      %1301 = vmatprep.mubr.bf16.mxu0 %v701
      %1302 = vmatmul.mubr.bf16.gmra.mrb[0].mxu0 %v700
      %v1303 = vpop.f32.mrb[0].mxu0
      %v1304 = vadd.f32 0.0, %v1303
      %v1305 = vpop.f32.mrb[0].mxu0
      %v1306 = vpop.f32.mrb[0].mxu0
      %v1307 = vadd.f32 0.0, %v1306
      %v1308 = vpop.f32.mrb[0].mxu0
      %1309 = vdwg.mxu0
      %1310 = vmatprep.subr.bf16.mxu0 0
      %1311 = vmatpush1.bf16.msra.mxu0 %v1085
      %1312 = vmatprep.subr.bf16.mxu0 0
      %1313 = vmatpush1.bf16.msra.mxu0 %v1086
      %1314 = vmatprep.subr.bf16.mxu0 0
      %1315 = vmatpush1.bf16.msra.mxu0 %v1087
      %1316 = vmatprep.subr.bf16.mxu0 0
      %1317 = vmatpush1.bf16.msra.mxu0 %v1088
      %1318 = vmatprep.subr.bf16.mxu0 0
      %1319 = vmatpush1.bf16.msra.mxu0 %v1089
      %1320 = vmatprep.subr.bf16.mxu0 0
      %1321 = vmatpush1.bf16.msra.mxu0 %v1090
      %1322 = vmatprep.subr.bf16.mxu0 0
      %1323 = vmatpush1.bf16.msra.mxu0 %v1091
      %1324 = vmatprep.subr.bf16.mxu0 0
      %1325 = vmatpush1.bf16.msra.mxu0 %v1092
      %1326 = vmatprep.subr.bf16.mxu0 0
      %1327 = vmatpush1.bf16.msra.mxu0 %v1093
      %1328 = vmatprep.subr.bf16.mxu0 0
      %1329 = vmatpush1.bf16.msra.mxu0 %v1094
      %1330 = vmatprep.subr.bf16.mxu0 0
      %1331 = vmatpush1.bf16.msra.mxu0 %v1095
      %1332 = vmatprep.subr.bf16.mxu0 0
      %1333 = vmatpush1.bf16.msra.mxu0 %v1096
      %1334 = vmatprep.subr.bf16.mxu0 0
      %1335 = vmatpush1.bf16.msra.mxu0 %v1097
      %1336 = vmatprep.subr.bf16.mxu0 0
      %1337 = vmatpush1.bf16.msra.mxu0 %v1098
      %1338 = vmatprep.subr.bf16.mxu0 0
      %1339 = vmatpush1.bf16.msra.mxu0 %v1099
      %1340 = vmatprep.subr.bf16.mxu0 0
      %1341 = vmatpush1.bf16.msra.mxu0 %v1100
      %1342 = vmatprep.mubr.bf16.mxu0 %v640
      %1343 = vmatmul.mubr.bf16.gmra.mrb[0].mxu0 %v639
      %v1344 = vpop.f32.mrb[0].mxu0
      %v1345 = vadd.f32 %v1248, %v1344
      %v1346 = vpop.f32.mrb[0].mxu0
      %v1347 = vpop.f32.mrb[0].mxu0
      %v1348 = vadd.f32 %v1251, %v1347
      %v1349 = vpop.f32.mrb[0].mxu0
      %1350 = vmatprep.mubr.bf16.mxu0 %v649
      %1351 = vmatmul.mubr.bf16.gmra.mrb[0].mxu0 %v648
      %v1352 = vpop.f32.mrb[0].mxu0
      %v1353 = vadd.f32 %v1256, %v1352
      %v1354 = vpop.f32.mrb[0].mxu0
      %v1355 = vpop.f32.mrb[0].mxu0
      %v1356 = vadd.f32 %v1259, %v1355
      %v1357 = vpop.f32.mrb[0].mxu0
      %1358 = vmatprep.mubr.bf16.mxu0 %v658
      %1359 = vmatmul.mubr.bf16.gmra.mrb[0].mxu0 %v657
      %v1360 = vpop.f32.mrb[0].mxu0
      %v1361 = vadd.f32 %v1264, %v1360
      %v1362 = vpop.f32.mrb[0].mxu0
      %v1363 = vpop.f32.mrb[0].mxu0
      %v1364 = vadd.f32 %v1267, %v1363
      %v1365 = vpop.f32.mrb[0].mxu0
      %1366 = vmatprep.mubr.bf16.mxu0 %v667
      %1367 = vmatmul.mubr.bf16.gmra.mrb[0].mxu0 %v666
      %v1368 = vpop.f32.mrb[0].mxu0
      %v1369 = vadd.f32 %v1272, %v1368
      %v1370 = vpop.f32.mrb[0].mxu0
      %v1371 = vpop.f32.mrb[0].mxu0
      %v1372 = vadd.f32 %v1275, %v1371
      %v1373 = vpop.f32.mrb[0].mxu0
      %1374 = vmatprep.mubr.bf16.mxu0 %v676
      %1375 = vmatmul.mubr.bf16.gmra.mrb[0].mxu0 %v675
      %v1376 = vpop.f32.mrb[0].mxu0
      %v1377 = vadd.f32 %v1280, %v1376
      %v1378 = vpop.f32.mrb[0].mxu0
      %v1379 = vpop.f32.mrb[0].mxu0
      %v1380 = vadd.f32 %v1283, %v1379
      %v1381 = vpop.f32.mrb[0].mxu0
      %1382 = vmatprep.mubr.bf16.mxu0 %v685
      %1383 = vmatmul.mubr.bf16.gmra.mrb[0].mxu0 %v684
      %v1384 = vpop.f32.mrb[0].mxu0
      %v1385 = vadd.f32 %v1288, %v1384
      %v1386 = vpop.f32.mrb[0].mxu0
      %v1387 = vpop.f32.mrb[0].mxu0
      %v1388 = vadd.f32 %v1291, %v1387
      %v1389 = vpop.f32.mrb[0].mxu0
      %1390 = vmatprep.mubr.bf16.mxu0 %v694
      %1391 = vmatmul.mubr.bf16.gmra.mrb[0].mxu0 %v693
      %v1392 = vpop.f32.mrb[0].mxu0
      %v1393 = vadd.f32 %v1296, %v1392
      %v1394 = vpop.f32.mrb[0].mxu0
      %v1395 = vpop.f32.mrb[0].mxu0
      %v1396 = vadd.f32 %v1299, %v1395
      %v1397 = vpop.f32.mrb[0].mxu0
      %1398 = vmatprep.mubr.bf16.mxu0 %v703
      %1399 = vmatmul.mubr.bf16.gmra.mrb[0].mxu0 %v702
      %v1400 = vpop.f32.mrb[0].mxu0
      %v1401 = vadd.f32 %v1304, %v1400
      %v1402 = vpop.f32.mrb[0].mxu0
      %v1403 = vpop.f32.mrb[0].mxu0
      %v1404 = vadd.f32 %v1307, %v1403
      %v1405 = vpop.f32.mrb[0].mxu0
      %1406 = vdwg.mxu0
      %1407 = vmatprep.subr.bf16.mxu0 0
      %1408 = vmatpush1.bf16.msra.mxu0 %v1101
      %1409 = vmatprep.subr.bf16.mxu0 0
      %1410 = vmatpush1.bf16.msra.mxu0 %v1102
      %1411 = vmatprep.subr.bf16.mxu0 0
      %1412 = vmatpush1.bf16.msra.mxu0 %v1103
      %1413 = vmatprep.subr.bf16.mxu0 0
      %1414 = vmatpush1.bf16.msra.mxu0 %v1104
      %1415 = vmatprep.subr.bf16.mxu0 0
      %1416 = vmatpush1.bf16.msra.mxu0 %v1105
      %1417 = vmatprep.subr.bf16.mxu0 0
      %1418 = vmatpush1.bf16.msra.mxu0 %v1106
      %1419 = vmatprep.subr.bf16.mxu0 0
      %1420 = vmatpush1.bf16.msra.mxu0 %v1107
      %1421 = vmatprep.subr.bf16.mxu0 0
      %1422 = vmatpush1.bf16.msra.mxu0 %v1108
      %1423 = vmatprep.subr.bf16.mxu0 0
      %1424 = vmatpush1.bf16.msra.mxu0 %v1109
      %1425 = vmatprep.subr.bf16.mxu0 0
      %1426 = vmatpush1.bf16.msra.mxu0 %v1110
      %1427 = vmatprep.subr.bf16.mxu0 0
      %1428 = vmatpush1.bf16.msra.mxu0 %v1111
      %1429 = vmatprep.subr.bf16.mxu0 0
      %1430 = vmatpush1.bf16.msra.mxu0 %v1112
      %1431 = vmatprep.subr.bf16.mxu0 0
      %1432 = vmatpush1.bf16.msra.mxu0 %v1113
      %1433 = vmatprep.subr.bf16.mxu0 0
      %1434 = vmatpush1.bf16.msra.mxu0 %v1114
      %1435 = vmatprep.subr.bf16.mxu0 0
      %1436 = vmatpush1.bf16.msra.mxu0 %v1115
      %1437 = vmatprep.subr.bf16.mxu0 0
      %1438 = vmatpush1.bf16.msra.mxu0 %v1116
      %1439 = vmatprep.mubr.bf16.mxu0 %v642
      %1440 = vmatmul.mubr.bf16.gmra.mrb[0].mxu0 %v641
      %v1441 = vpop.f32.mrb[0].mxu0
      %v1442 = vadd.f32 %v1345, %v1441
      %v1443 = vpop.f32.mrb[0].mxu0
      %v1444 = vpop.f32.mrb[0].mxu0
      %v1445 = vadd.f32 %v1348, %v1444
      %v1446 = vpop.f32.mrb[0].mxu0
      %1447 = vmatprep.mubr.bf16.mxu0 %v651
      %1448 = vmatmul.mubr.bf16.gmra.mrb[0].mxu0 %v650
      %v1449 = vpop.f32.mrb[0].mxu0
      %v1450 = vadd.f32 %v1353, %v1449
      %v1451 = vpop.f32.mrb[0].mxu0
      %v1452 = vpop.f32.mrb[0].mxu0
      %v1453 = vadd.f32 %v1356, %v1452
      %v1454 = vpop.f32.mrb[0].mxu0
      %1455 = vmatprep.mubr.bf16.mxu0 %v660
      %1456 = vmatmul.mubr.bf16.gmra.mrb[0].mxu0 %v659
      %v1457 = vpop.f32.mrb[0].mxu0
      %v1458 = vadd.f32 %v1361, %v1457
      %v1459 = vpop.f32.mrb[0].mxu0
      %v1460 = vpop.f32.mrb[0].mxu0
      %v1461 = vadd.f32 %v1364, %v1460
      %v1462 = vpop.f32.mrb[0].mxu0
      %1463 = vmatprep.mubr.bf16.mxu0 %v669
      %1464 = vmatmul.mubr.bf16.gmra.mrb[0].mxu0 %v668
      %v1465 = vpop.f32.mrb[0].mxu0
      %v1466 = vadd.f32 %v1369, %v1465
      %v1467 = vpop.f32.mrb[0].mxu0
      %v1468 = vpop.f32.mrb[0].mxu0
      %v1469 = vadd.f32 %v1372, %v1468
      %v1470 = vpop.f32.mrb[0].mxu0
      %1471 = vmatprep.mubr.bf16.mxu0 %v678
      %1472 = vmatmul.mubr.bf16.gmra.mrb[0].mxu0 %v677
      %v1473 = vpop.f32.mrb[0].mxu0
      %v1474 = vadd.f32 %v1377, %v1473
      %v1475 = vpop.f32.mrb[0].mxu0
      %v1476 = vpop.f32.mrb[0].mxu0
      %v1477 = vadd.f32 %v1380, %v1476
      %v1478 = vpop.f32.mrb[0].mxu0
      %1479 = vmatprep.mubr.bf16.mxu0 %v687
      %1480 = vmatmul.mubr.bf16.gmra.mrb[0].mxu0 %v686
      %v1481 = vpop.f32.mrb[0].mxu0
      %v1482 = vadd.f32 %v1385, %v1481
      %v1483 = vpop.f32.mrb[0].mxu0
      %v1484 = vpop.f32.mrb[0].mxu0
      %v1485 = vadd.f32 %v1388, %v1484
      %v1486 = vpop.f32.mrb[0].mxu0
      %1487 = vmatprep.mubr.bf16.mxu0 %v696
      %1488 = vmatmul.mubr.bf16.gmra.mrb[0].mxu0 %v695
      %v1489 = vpop.f32.mrb[0].mxu0
      %v1490 = vadd.f32 %v1393, %v1489
      %v1491 = vpop.f32.mrb[0].mxu0
      %v1492 = vpop.f32.mrb[0].mxu0
      %v1493 = vadd.f32 %v1396, %v1492
      %v1494 = vpop.f32.mrb[0].mxu0
      %1495 = vmatprep.mubr.bf16.mxu0 %v705
      %1496 = vmatmul.mubr.bf16.gmra.mrb[0].mxu0 %v704
      %v1497 = vpop.f32.mrb[0].mxu0
      %v1498 = vadd.f32 %v1401, %v1497
      %v1499 = vpop.f32.mrb[0].mxu0
      %v1500 = vpop.f32.mrb[0].mxu0
      %v1501 = vadd.f32 %v1404, %v1500
      %v1502 = vpop.f32.mrb[0].mxu0
      %1503 = vdwg.mxu0
      %1504 = vmatprep.subr.bf16.mxu0 0
      %1505 = vmatpush1.bf16.msra.mxu0 %v1117
      %1506 = vmatprep.subr.bf16.mxu0 0
      %1507 = vmatpush1.bf16.msra.mxu0 %v1118
      %1508 = vmatprep.subr.bf16.mxu0 0
      %1509 = vmatpush1.bf16.msra.mxu0 %v1119
      %1510 = vmatprep.subr.bf16.mxu0 0
      %1511 = vmatpush1.bf16.msra.mxu0 %v1120
      %1512 = vmatprep.subr.bf16.mxu0 0
      %1513 = vmatpush1.bf16.msra.mxu0 %v1121
      %1514 = vmatprep.subr.bf16.mxu0 0
      %1515 = vmatpush1.bf16.msra.mxu0 %v1122
      %1516 = vmatprep.subr.bf16.mxu0 0
      %1517 = vmatpush1.bf16.msra.mxu0 %v1123
      %1518 = vmatprep.subr.bf16.mxu0 0
      %1519 = vmatpush1.bf16.msra.mxu0 %v1124
      %1520 = vmatprep.subr.bf16.mxu0 0
      %1521 = vmatpush1.bf16.msra.mxu0 %v1125
      %1522 = vmatprep.subr.bf16.mxu0 0
      %1523 = vmatpush1.bf16.msra.mxu0 %v1126
      %1524 = vmatprep.subr.bf16.mxu0 0
      %1525 = vmatpush1.bf16.msra.mxu0 %v1127
      %1526 = vmatprep.subr.bf16.mxu0 0
      %1527 = vmatpush1.bf16.msra.mxu0 %v1128
      %1528 = vmatprep.subr.bf16.mxu0 0
      %1529 = vmatpush1.bf16.msra.mxu0 %v1129
      %1530 = vmatprep.subr.bf16.mxu0 0
      %1531 = vmatpush1.bf16.msra.mxu0 %v1130
      %1532 = vmatprep.subr.bf16.mxu0 0
      %1533 = vmatpush1.bf16.msra.mxu0 %v1131
      %1534 = vmatprep.subr.bf16.mxu0 0
      %1535 = vmatpush1.bf16.msra.mxu0 %v1132
      %1536 = vmatprep.mubr.bf16.mxu0 %v644
      %1537 = vmatmul.mubr.bf16.gmra.mrb[0].mxu0 %v643
      %v1538 = vpop.f32.mrb[0].mxu0
      %v1539 = vadd.f32 %v1442, %v1538
      %v1540 = vpop.f32.mrb[0].mxu0
      %v1541 = vpop.f32.mrb[0].mxu0
      %v1542 = vadd.f32 %v1445, %v1541
      %v1543 = vpop.f32.mrb[0].mxu0
      %1544 = vmatprep.mubr.bf16.mxu0 %v653
      %1545 = vmatmul.mubr.bf16.gmra.mrb[0].mxu0 %v652
      %v1546 = vpop.f32.mrb[0].mxu0
      %v1547 = vadd.f32 %v1450, %v1546
      %v1548 = vpop.f32.mrb[0].mxu0
      %v1549 = vpop.f32.mrb[0].mxu0
      %v1550 = vadd.f32 %v1453, %v1549
      %v1551 = vpop.f32.mrb[0].mxu0
      %1552 = vmatprep.mubr.bf16.mxu0 %v662
      %1553 = vmatmul.mubr.bf16.gmra.mrb[0].mxu0 %v661
      %v1554 = vpop.f32.mrb[0].mxu0
      %v1555 = vadd.f32 %v1458, %v1554
      %v1556 = vpop.f32.mrb[0].mxu0
      %v1557 = vpop.f32.mrb[0].mxu0
      %v1558 = vadd.f32 %v1461, %v1557
      %v1559 = vpop.f32.mrb[0].mxu0
      %1560 = vmatprep.mubr.bf16.mxu0 %v671
      %1561 = vmatmul.mubr.bf16.gmra.mrb[0].mxu0 %v670
      %v1562 = vpop.f32.mrb[0].mxu0
      %v1563 = vadd.f32 %v1466, %v1562
      %v1564 = vpop.f32.mrb[0].mxu0
      %v1565 = vpop.f32.mrb[0].mxu0
      %v1566 = vadd.f32 %v1469, %v1565
      %v1567 = vpop.f32.mrb[0].mxu0
      %1568 = vmatprep.mubr.bf16.mxu0 %v680
      %1569 = vmatmul.mubr.bf16.gmra.mrb[0].mxu0 %v679
      %v1570 = vpop.f32.mrb[0].mxu0
      %v1571 = vadd.f32 %v1474, %v1570
      %v1572 = vpop.f32.mrb[0].mxu0
      %v1573 = vpop.f32.mrb[0].mxu0
      %v1574 = vadd.f32 %v1477, %v1573
      %v1575 = vpop.f32.mrb[0].mxu0
      %1576 = vmatprep.mubr.bf16.mxu0 %v689
      %1577 = vmatmul.mubr.bf16.gmra.mrb[0].mxu0 %v688
      %v1578 = vpop.f32.mrb[0].mxu0
      %v1579 = vadd.f32 %v1482, %v1578
      %v1580 = vpop.f32.mrb[0].mxu0
      %v1581 = vpop.f32.mrb[0].mxu0
      %v1582 = vadd.f32 %v1485, %v1581
      %v1583 = vpop.f32.mrb[0].mxu0
      %1584 = vmatprep.mubr.bf16.mxu0 %v698
      %1585 = vmatmul.mubr.bf16.gmra.mrb[0].mxu0 %v697
      %v1586 = vpop.f32.mrb[0].mxu0
      %v1587 = vadd.f32 %v1490, %v1586
      %v1588 = vpop.f32.mrb[0].mxu0
      %v1589 = vpop.f32.mrb[0].mxu0
      %v1590 = vadd.f32 %v1493, %v1589
      %v1591 = vpop.f32.mrb[0].mxu0
      %1592 = vmatprep.mubr.bf16.mxu0 %v707
      %1593 = vmatmul.mubr.bf16.gmra.mrb[0].mxu0 %v706
      %v1594 = vpop.f32.mrb[0].mxu0
      %v1595 = vadd.f32 %v1498, %v1594
      %v1596 = vpop.f32.mrb[0].mxu0
      %v1597 = vpop.f32.mrb[0].mxu0
      %v1598 = vadd.f32 %v1501, %v1597
      %v1599 = vpop.f32.mrb[0].mxu0
      %1600 = vdwg.mxu0
      %1601 = vmatprep.subr.bf16.mxu0 0
      %1602 = vmatpush1.bf16.msra.mxu0 %v1133
      %1603 = vmatprep.subr.bf16.mxu0 0
      %1604 = vmatpush1.bf16.msra.mxu0 %v1134
      %1605 = vmatprep.subr.bf16.mxu0 0
      %1606 = vmatpush1.bf16.msra.mxu0 %v1135
      %1607 = vmatprep.subr.bf16.mxu0 0
      %1608 = vmatpush1.bf16.msra.mxu0 %v1136
      %1609 = vmatprep.subr.bf16.mxu0 0
      %1610 = vmatpush1.bf16.msra.mxu0 %v1137
      %1611 = vmatprep.subr.bf16.mxu0 0
      %1612 = vmatpush1.bf16.msra.mxu0 %v1138
      %1613 = vmatprep.subr.bf16.mxu0 0
      %1614 = vmatpush1.bf16.msra.mxu0 %v1139
      %1615 = vmatprep.subr.bf16.mxu0 0
      %1616 = vmatpush1.bf16.msra.mxu0 %v1140
      %1617 = vmatprep.subr.bf16.mxu0 0
      %1618 = vmatpush1.bf16.msra.mxu0 0
      %1619 = vmatprep.subr.bf16.mxu0 0
      %1620 = vmatpush1.bf16.msra.mxu0 0
      %1621 = vmatprep.subr.bf16.mxu0 0
      %1622 = vmatpush1.bf16.msra.mxu0 0
      %1623 = vmatprep.subr.bf16.mxu0 0
      %1624 = vmatpush1.bf16.msra.mxu0 0
      %1625 = vmatprep.subr.bf16.mxu0 0
      %1626 = vmatpush1.bf16.msra.mxu0 0
      %1627 = vmatprep.subr.bf16.mxu0 0
      %1628 = vmatpush1.bf16.msra.mxu0 0
      %1629 = vmatprep.subr.bf16.mxu0 0
      %1630 = vmatpush1.bf16.msra.mxu0 0
      %1631 = vmatprep.subr.bf16.mxu0 0
      %1632 = vmatpush1.bf16.msra.mxu0 0
      %1633 = vmatprep.mubr.bf16.mxu0 0
      %1634 = vmatmul.mubr.bf16.gmra.mrb[0].mxu0 %v645
      %v1635 = vpop.f32.mrb[0].mxu0
      %v1636 = vadd.f32 %v1539, %v1635
      %v1637 = vpop.f32.mrb[0].mxu0
      %v1638 = vpop.f32.mrb[0].mxu0
      %v1639 = vadd.f32 %v1542, %v1638
      %v1640 = vpop.f32.mrb[0].mxu0
      %1641 = vmatprep.mubr.bf16.mxu0 0
      %1642 = vmatmul.mubr.bf16.gmra.mrb[0].mxu0 %v654
      %v1643 = vpop.f32.mrb[0].mxu0
      %v1644 = vadd.f32 %v1547, %v1643
      %v1645 = vpop.f32.mrb[0].mxu0
      %v1646 = vpop.f32.mrb[0].mxu0
      %v1647 = vadd.f32 %v1550, %v1646
      %v1648 = vpop.f32.mrb[0].mxu0
      %1649 = vmatprep.mubr.bf16.mxu0 0
      %1650 = vmatmul.mubr.bf16.gmra.mrb[0].mxu0 %v663
      %v1651 = vpop.f32.mrb[0].mxu0
      %v1652 = vadd.f32 %v1555, %v1651
      %v1653 = vpop.f32.mrb[0].mxu0
      %v1654 = vpop.f32.mrb[0].mxu0
      %v1655 = vadd.f32 %v1558, %v1654
      %v1656 = vpop.f32.mrb[0].mxu0
      %1657 = vmatprep.mubr.bf16.mxu0 0
      %1658 = vmatmul.mubr.bf16.gmra.mrb[0].mxu0 %v672
      %v1659 = vpop.f32.mrb[0].mxu0
      %v1660 = vadd.f32 %v1563, %v1659
      %v1661 = vpop.f32.mrb[0].mxu0
      %v1662 = vpop.f32.mrb[0].mxu0
      %v1663 = vadd.f32 %v1566, %v1662
      %v1664 = vpop.f32.mrb[0].mxu0
      %1665 = vmatprep.mubr.bf16.mxu0 0
      %1666 = vmatmul.mubr.bf16.gmra.mrb[0].mxu0 %v681
      %v1667 = vpop.f32.mrb[0].mxu0
      %v1668 = vadd.f32 %v1571, %v1667
      %v1669 = vpop.f32.mrb[0].mxu0
      %v1670 = vpop.f32.mrb[0].mxu0
      %v1671 = vadd.f32 %v1574, %v1670
      %v1672 = vpop.f32.mrb[0].mxu0
      %1673 = vmatprep.mubr.bf16.mxu0 0
      %1674 = vmatmul.mubr.bf16.gmra.mrb[0].mxu0 %v690
      %v1675 = vpop.f32.mrb[0].mxu0
      %v1676 = vadd.f32 %v1579, %v1675
      %v1677 = vpop.f32.mrb[0].mxu0
      %v1678 = vpop.f32.mrb[0].mxu0
      %v1679 = vadd.f32 %v1582, %v1678
      %v1680 = vpop.f32.mrb[0].mxu0
      %1681 = vmatprep.mubr.bf16.mxu0 0
      %1682 = vmatmul.mubr.bf16.gmra.mrb[0].mxu0 %v699
      %v1683 = vpop.f32.mrb[0].mxu0
      %v1684 = vadd.f32 %v1587, %v1683
      %v1685 = vpop.f32.mrb[0].mxu0
      %v1686 = vpop.f32.mrb[0].mxu0
      %v1687 = vadd.f32 %v1590, %v1686
      %v1688 = vpop.f32.mrb[0].mxu0
      %1689 = vmatprep.mubr.bf16.mxu0 0
      %1690 = vmatmul.mubr.bf16.gmra.mrb[0].mxu0 %v708
      %v1691 = vpop.f32.mrb[0].mxu0
      %v1692 = vadd.f32 %v1595, %v1691
      %v1693 = vpop.f32.mrb[0].mxu0
      %v1694 = vpop.f32.mrb[0].mxu0
      %v1695 = vadd.f32 %v1598, %v1694
      %v1696 = vpop.f32.mrb[0].mxu0
      %1697 = vdwg.mxu0
      %v1698 = vpack.c.bf16 %v1639, %v1636
      %v1699 = vpack.c.bf16 %v1647, %v1644
      %v1700 = vpack.c.bf16 %v1655, %v1652
      %v1701 = vpack.c.bf16 %v1663, %v1660
      %v1702 = vpack.c.bf16 %v1671, %v1668
      %v1703 = vpack.c.bf16 %v1679, %v1676
      %v1704 = vpack.c.bf16 %v1687, %v1684
      %v1705 = vpack.c.bf16 %v1695, %v1692
      %v1714 = vunpack.c.l.b16 %v1698
      %v1715 = vunpack.c.h.b16 %v1698
      %v1716 = vunpack.c.l.b16 %v1699
      %v1717 = vunpack.c.h.b16 %v1699
      %v1718 = vunpack.c.l.b16 %v1700
      %v1719 = vunpack.c.h.b16 %v1700
      %v1720 = vunpack.c.l.b16 %v1701
      %v1721 = vunpack.c.h.b16 %v1701
      %v1722 = vunpack.c.l.b16 %v1702
      %v1723 = vunpack.c.h.b16 %v1702
      %v1724 = vunpack.c.l.b16 %v1703
      %v1725 = vunpack.c.h.b16 %v1703
      %v1726 = vunpack.c.l.b16 %v1704
      %v1727 = vunpack.c.h.b16 %v1704
      %v1728 = vunpack.c.l.b16 %v1705
      %v1729 = vunpack.c.h.b16 %v1705
      %v1730 = vpack.c.b16 %v1714, %v1714
      %v1731 = vpack.c.b16 %v1715, %v1715
      %v1732 = vpack.c.b16 %v1716, %v1716
      %v1733 = vpack.c.b16 %v1717, %v1717
      %v1734 = vpack.c.b16 %v1718, %v1718
      %v1735 = vpack.c.b16 %v1719, %v1719
      %v1736 = vpack.c.b16 %v1720, %v1720
      %v1737 = vpack.c.b16 %v1721, %v1721
      %v1738 = vpack.c.b16 %v1722, %v1722
      %v1739 = vpack.c.b16 %v1723, %v1723
      %v1740 = vpack.c.b16 %v1724, %v1724
      %v1741 = vpack.c.b16 %v1725, %v1725
      %v1742 = vpack.c.b16 %v1726, %v1726
      %v1743 = vpack.c.b16 %v1727, %v1727
      %v1744 = vpack.c.b16 %v1728, %v1728
      %v1745 = vpack.c.b16 %v1729, %v1729
      %1762 = vst [vmem:[%s182] sm:$0xf] %v1730
      %1763 = vst [vmem:[%s182 + $0x4] sm:$0xf] %v1731
      %1764 = vst [vmem:[%s182 + $0x8] sm:$0xf] %v1732
      %1765 = vst [vmem:[%s182 + $0xc] sm:$0xf] %v1733
      %1766 = vst [vmem:[%s182 + $0x10] sm:$0xf] %v1734
      %1767 = vst [vmem:[%s182 + $0x14] sm:$0xf] %v1735
      %1768 = vst [vmem:[%s182 + $0x18] sm:$0xf] %v1736
      %1769 = vst [vmem:[%s182 + $0x1c] sm:$0xf] %v1737
      %1770 = vst [vmem:[%s182 + $0x20] sm:$0xf] %v1738
      %1771 = vst [vmem:[%s182 + $0x24] sm:$0xf] %v1739
      %1772 = vst [vmem:[%s182 + $0x28] sm:$0xf] %v1740
      %1773 = vst [vmem:[%s182 + $0x2c] sm:$0xf] %v1741
      %1774 = vst [vmem:[%s182 + $0x30] sm:$0xf] %v1742
      %1775 = vst [vmem:[%s182 + $0x34] sm:$0xf] %v1743
      %1776 = vst [vmem:[%s182 + $0x38] sm:$0xf] %v1744
      %1777 = vst [vmem:[%s182 + $0x3c] sm:$0xf] %v1745
      %v1778 = vadd.f32 %v1636, %v1639
      %v1779 = vadd.f32 %v1778, %v1644
      %v1780 = vadd.f32 %v1779, %v1647
      %v1781 = vadd.f32 %v1780, %v1652
      %v1782 = vadd.f32 %v1781, %v1655
      %v1783 = vadd.f32 %v1782, %v1660
      %v1784 = vadd.f32 %v1783, %v1663
      %v1785 = vadd.f32 %v1784, %v1668
      %v1786 = vadd.f32 %v1785, %v1671
      %v1787 = vadd.f32 %v1786, %v1676
      %v1788 = vadd.f32 %v1787, %v1679
      %v1789 = vadd.f32 %v1788, %v1684
      %v1790 = vadd.f32 %v1789, %v1687
      %v1791 = vadd.f32 %v1790, %v1692
      %v1792 = vadd.f32 %v1791, %v1695
      %v1793 = vrot.slane %v1792, 4
      %v1794 = vadd.f32 %v1792, %v1793
      %v1795 = vrot.slane %v1794, 2
      %v1796 = vadd.f32 %v1794, %v1795
      %v1797 = vrot.slane %v1796, 1
      %v1798 = vadd.f32 %v1796, %v1797
      %v1799 = vmul.f32 %v1636, %v1636
      %v1800 = vmul.f32 %v1639, %v1639
      %v1801 = vmul.f32 %v1644, %v1644
      %v1802 = vmul.f32 %v1647, %v1647
      %v1803 = vmul.f32 %v1652, %v1652
      %v1804 = vmul.f32 %v1655, %v1655
      %v1805 = vmul.f32 %v1660, %v1660
      %v1806 = vmul.f32 %v1663, %v1663
      %v1807 = vmul.f32 %v1668, %v1668
      %v1808 = vmul.f32 %v1671, %v1671
      %v1809 = vmul.f32 %v1676, %v1676
      %v1810 = vmul.f32 %v1679, %v1679
      %v1811 = vmul.f32 %v1684, %v1684
      %v1812 = vmul.f32 %v1687, %v1687
      %v1813 = vmul.f32 %v1692, %v1692
      %v1814 = vmul.f32 %v1695, %v1695
      %v1815 = vadd.f32 %v1799, %v1800
      %v1816 = vadd.f32 %v1815, %v1801
      %v1817 = vadd.f32 %v1816, %v1802
      %v1818 = vadd.f32 %v1817, %v1803
      %v1819 = vadd.f32 %v1818, %v1804
      %v1820 = vadd.f32 %v1819, %v1805
      %v1821 = vadd.f32 %v1820, %v1806
      %v1822 = vadd.f32 %v1821, %v1807
      %v1823 = vadd.f32 %v1822, %v1808
      %v1824 = vadd.f32 %v1823, %v1809
      %v1825 = vadd.f32 %v1824, %v1810
      %v1826 = vadd.f32 %v1825, %v1811
      %v1827 = vadd.f32 %v1826, %v1812
      %v1828 = vadd.f32 %v1827, %v1813
      %v1829 = vadd.f32 %v1828, %v1814
      %v1830 = vrot.slane %v1829, 4
      %v1831 = vadd.f32 %v1829, %v1830
      %v1832 = vrot.slane %v1831, 2
      %v1833 = vadd.f32 %v1831, %v1832
      %v1834 = vrot.slane %v1833, 1
      %v1835 = vadd.f32 %v1833, %v1834
      %vm1836 = vcmask 1040384
      %v1837 = vsel %vm1836, %v1798, %v1835
      %1838 = vst [vmem:[%s187] sm:$0x3] %v1837
      %s1839 = smul.u32 16, %s15
      %p1840 = scmp.lt.s32.totalorder %s1839, 63
      %s1841 = scalar_select %p1840, %s1839, 63
      %s1842 = smul.addr %s1841, 4
      %s1843 = scalar_lea.vmem %s2, %s1842
      %p1844 = scmp.lt.s32.totalorder %s15, 3
      %s1845 = scalar_select %p1844, %s15, 3
      %s1846 = smul.addr %s1845, 2
      %s1847 = scalar_lea.vmem %s3, %s1846
      // Predicated region
      $region29: #{resnet_block_forward.4} parent=27 // pred_check
        %p1848 = pneg %p80
      $region30: #{resnet_block_forward.4} parent=27 // pred_check_branch
        %1850 = sbr.rel (%p1848) target = $region32
      $region31: #{resnet_block_forward.4} parent=27 // pred_region
        %s1851 = smul.u32 16, %s15
      $region32: #{resnet_block_forward.4} parent=27 // pred_fallthru
        _
      // Predicated region
      $region33: #{resnet_block_forward.4} parent=27 // pred_check
        %p1852 = pneg %p106
      $region34: #{resnet_block_forward.4} parent=27 // pred_check_branch
        %1854 = sbr.rel (%p1852) target = $region36
      $region35: #{resnet_block_forward.4} parent=27 // pred_region
        _
      $region36: #{resnet_block_forward.4} parent=27 // pred_fallthru
        _
    $region28: #{resnet_block_forward.4} parent=5 // pred_fallthru
      _
    %p1855 = scmp.le.s32.totalorder 2, %s10
    // Predicated region
    $region37: #{resnet_block_forward.4} parent=5 // pred_check
      %p1856 = pneg %p1855
    $region38: #{resnet_block_forward.4} parent=5 // pred_check_branch
      %1858 = sbr.rel (%p1856) target = $region40
    $region39: #{resnet_block_forward.4} parent=5 // pred_region
      %s1859 = ssub.s32 %s10, 2
      // Predicated region
      $region41: #{resnet_block_forward.4} parent=39 // pred_check
        %p1860 = pneg %p86
      $region42: #{resnet_block_forward.4} parent=39 // pred_check_branch
        %1862 = sbr.rel (%p1860) target = $region44
      $region43: #{resnet_block_forward.4} parent=39 // pred_region
        %s1863 = smul.u32 16, %s16
        %p1864 = scmp.lt.s32.totalorder %s1863, 63
        %s1865 = scalar_select %p1864, %s1863, 63
        %s1866 = smul.addr %s1865, 4
        %s1867 = scalar_lea.vmem %s2, %s1866
      $region44: #{resnet_block_forward.4} parent=39 // pred_fallthru
        _
      // Predicated region
      $region45: #{resnet_block_forward.4} parent=39 // pred_check
        %p1868 = pneg %p112
      $region46: #{resnet_block_forward.4} parent=39 // pred_check_branch
        %1870 = sbr.rel (%p1868) target = $region48
      $region47: #{resnet_block_forward.4} parent=39 // pred_region
        %p1871 = scmp.lt.s32.totalorder %s16, 3
        %s1872 = scalar_select %p1871, %s16, 3
        %s1873 = smul.addr %s1872, 2
        %s1874 = scalar_lea.vmem %s3, %s1873
      $region48: #{resnet_block_forward.4} parent=39 // pred_fallthru
        _
    $region40: #{resnet_block_forward.4} parent=5 // pred_fallthru
      _
  $region6: #{resnet_block_forward.4} parent=0 // loop_footer
    %s14 = sadd.s32 1, %s10
  $region7: #{resnet_block_forward.4} parent=0 // loop_footer_branch
    %9 = sbr.rel target = $region3
  $region8: #{resnet_block_forward.4} parent=0 // loop_exit
    _

// kernel: resnet_block_forward.7
$region0: #{resnet_block_forward.7}
  #allocation0 [shape = 'u32[]', space=smem, size = 0x4, offset = 0x4, fixed_abs, tag = 'smem constant byte address 0x4 - core index']
  #allocation1 [shape = 'u32[144,128]{1,0:T(1,128)}', space=vmem, size = 0x12000, scoped, tag = 'internal scratch']
  %s0 = inlined_call_operand.vmem [shape: bf16[512,128], index: 0, kind: input, shape index: {}]
  %s1 = inlined_call_operand.vmem [shape: f32[1,128], index: 1, kind: input, shape index: {}]
  %s2 = inlined_call_operand.vmem [shape: f32[1,128], index: 2, kind: input, shape index: {}]
  %s3 = inlined_call_operand.vmem [shape: bf16[512,128], index: 3, kind: input, shape index: {}]
  %s4 = inlined_call_operand.vmem [shape: f32[512,128], index: 4, kind: output, shape index: {}]
  %s5 = sld [smem:[#allocation0]]
  $region49: #{resnet_block_forward.7} parent=0
    _
  %s7 = ssub.s32 1, %s5
  %s8 = scalar_select 0, %s7, %s5
  loop: start=0, step=1, limit=6
  $region2: #{resnet_block_forward.7} parent=0 // loop_pre_header
    _
  $region3: #{resnet_block_forward.7} parent=0 // loop_header
    %s10 = sphi 0, %s14
    %p11 = scmp.ge.s32.totalorder %s10, 6
    %s20 = sphi 0, %s22
    %s23 = sphi 0, %s20
    %s24 = sphi 0, %s23
    %s40 = sphi 0, %s24
    %s44 = sphi 0, %s44
    %s46 = sphi 0, %s44
    %s47 = sphi 0, %s46
    %s61 = sphi 0, %s47
    %s65 = sphi 0, %s65
    %s67 = sphi 0, %s65
    %s68 = sphi 0, %s67
    %s82 = sphi 0, %s68
    %s88 = sphi 0, %s90
    %s91 = sphi 0, %s88
    %s92 = sphi 0, %s91
    %s108 = sphi 0, %s92
    %s114 = sphi 0, %s116
    %s117 = sphi 0, %s114
    %s118 = sphi 0, %s117
    %s134 = sphi 0, %s118
  $region4: #{resnet_block_forward.7} parent=0 // loop_header_branch
    %13 = sbr.rel (%p11) target = $region8
  $region5: #{resnet_block_forward.7} parent=0 // loop_body
    %s15 = ssub.s32 %s10, 1
    %s16 = ssub.s32 %s10, 2
    %s17 = sadd.s32 %s10, 1
    %s18 = ssub.s32 %s10, %s17
    %p19 = scmp.eq.s32.totalorder %s18, 0
    %s21 = sadd.s32 %s20, 1
    %s22 = scalar_select %p19, %s20, %s21
    %p25 = pneg %p19
    %p26 = scmp.eq.s32.totalorder %s10, 3
    %p27 = por %p25, %p26
    %p28 = scmp.ne.s32.totalorder %s20, %s23
    %p29 = scmp.eq.s32.totalorder %s10, 0
    %p30 = por %p28, %p29
    %p31 = scmp.ne.s32.totalorder %s20, %s23
    %p32 = scmp.eq.s32.totalorder %s15, 3
    %p33 = por %p31, %p32
    %p34 = scmp.ne.s32.totalorder %s23, %s24
    %p35 = scmp.eq.s32.totalorder %s15, 0
    %p36 = por %p34, %p35
    %p37 = scmp.ne.s32.totalorder %s23, %s24
    %p38 = scmp.eq.s32.totalorder %s16, 3
    %p39 = por %p37, %p38
    %p41 = scmp.ne.s32.totalorder %s24, %s40
    %p42 = scmp.eq.s32.totalorder %s16, 0
    %p43 = por %p41, %p42
    %s45 = sadd.s32 %s44, 1
    %p48 = scmp.eq.s32.totalorder %s10, 3
    %p49 = scmp.ne.s32.totalorder %s44, %s46
    %p50 = scmp.eq.s32.totalorder %s10, 0
    %p51 = por %p49, %p50
    %p52 = scmp.ne.s32.totalorder %s44, %s46
    %p53 = scmp.eq.s32.totalorder %s15, 3
    %p54 = por %p52, %p53
    %p55 = scmp.ne.s32.totalorder %s46, %s47
    %p56 = scmp.eq.s32.totalorder %s15, 0
    %p57 = por %p55, %p56
    %p58 = scmp.ne.s32.totalorder %s46, %s47
    %p59 = scmp.eq.s32.totalorder %s16, 3
    %p60 = por %p58, %p59
    %p62 = scmp.ne.s32.totalorder %s47, %s61
    %p63 = scmp.eq.s32.totalorder %s16, 0
    %p64 = por %p62, %p63
    %s66 = sadd.s32 %s65, 1
    %p69 = scmp.eq.s32.totalorder %s10, 3
    %p70 = scmp.ne.s32.totalorder %s65, %s67
    %p71 = scmp.eq.s32.totalorder %s10, 0
    %p72 = por %p70, %p71
    %p73 = scmp.ne.s32.totalorder %s65, %s67
    %p74 = scmp.eq.s32.totalorder %s15, 3
    %p75 = por %p73, %p74
    %p76 = scmp.ne.s32.totalorder %s67, %s68
    %p77 = scmp.eq.s32.totalorder %s15, 0
    %p78 = por %p76, %p77
    %p79 = scmp.ne.s32.totalorder %s67, %s68
    %p80 = scmp.eq.s32.totalorder %s16, 3
    %p81 = por %p79, %p80
    %p83 = scmp.ne.s32.totalorder %s68, %s82
    %p84 = scmp.eq.s32.totalorder %s16, 0
    %p85 = por %p83, %p84
    %s86 = ssub.s32 %s10, %s17
    %p87 = scmp.eq.s32.totalorder %s86, 0
    %s89 = sadd.s32 %s88, 1
    %s90 = scalar_select %p87, %s88, %s89
    %p93 = pneg %p87
    %p94 = scmp.eq.s32.totalorder %s10, 3
    %p95 = por %p93, %p94
    %p96 = scmp.ne.s32.totalorder %s88, %s91
    %p97 = scmp.eq.s32.totalorder %s10, 0
    %p98 = por %p96, %p97
    %p99 = scmp.ne.s32.totalorder %s88, %s91
    %p100 = scmp.eq.s32.totalorder %s15, 3
    %p101 = por %p99, %p100
    %p102 = scmp.ne.s32.totalorder %s91, %s92
    %p103 = scmp.eq.s32.totalorder %s15, 0
    %p104 = por %p102, %p103
    %p105 = scmp.ne.s32.totalorder %s91, %s92
    %p106 = scmp.eq.s32.totalorder %s16, 3
    %p107 = por %p105, %p106
    %p109 = scmp.ne.s32.totalorder %s92, %s108
    %p110 = scmp.eq.s32.totalorder %s16, 0
    %p111 = por %p109, %p110
    %s112 = ssub.s32 %s10, %s17
    %p113 = scmp.eq.s32.totalorder %s112, 0
    %s115 = sadd.s32 %s114, 1
    %s116 = scalar_select %p113, %s114, %s115
    %p119 = pneg %p113
    %p120 = scmp.eq.s32.totalorder %s10, 3
    %p121 = por %p119, %p120
    %p122 = scmp.ne.s32.totalorder %s114, %s117
    %p123 = scmp.eq.s32.totalorder %s10, 0
    %p124 = por %p122, %p123
    %p125 = scmp.ne.s32.totalorder %s114, %s117
    %p126 = scmp.eq.s32.totalorder %s15, 3
    %p127 = por %p125, %p126
    %p128 = scmp.ne.s32.totalorder %s117, %s118
    %p129 = scmp.eq.s32.totalorder %s15, 0
    %p130 = por %p128, %p129
    %p131 = scmp.ne.s32.totalorder %s117, %s118
    %p132 = scmp.eq.s32.totalorder %s16, 3
    %p133 = por %p131, %p132
    %p135 = scmp.ne.s32.totalorder %s118, %s134
    %p136 = scmp.eq.s32.totalorder %s16, 0
    %p137 = por %p135, %p136
    %p138 = scmp.le.s32.totalorder 1, %s10
    %p139 = scmp.lt.s32.totalorder %s10, 5
    %p140 = pnand %p138, %p139
    %p141 = pneg %p140
    // Predicated region
    $region9: #{resnet_block_forward.7} parent=5 // pred_check
      _
    $region10: #{resnet_block_forward.7} parent=5 // pred_check_branch
      %143 = sbr.rel (%p140) target = $region12
    $region11: #{resnet_block_forward.7} parent=5 // pred_region
      %s144 = ssub.s32 %s10, 1
      // Predicated region
      $region13: #{resnet_block_forward.7} parent=11 // pred_check
        %p145 = pneg %p57
      $region14: #{resnet_block_forward.7} parent=11 // pred_check_branch
        %147 = sbr.rel (%p145) target = $region16
      $region15: #{resnet_block_forward.7} parent=11 // pred_region
        _
      $region16: #{resnet_block_forward.7} parent=11 // pred_fallthru
        _
      // Predicated region
      $region17: #{resnet_block_forward.7} parent=11 // pred_check
        %p148 = pneg %p78
      $region18: #{resnet_block_forward.7} parent=11 // pred_check_branch
        %150 = sbr.rel (%p148) target = $region20
      $region19: #{resnet_block_forward.7} parent=11 // pred_region
        _
      $region20: #{resnet_block_forward.7} parent=11 // pred_fallthru
        _
    $region12: #{resnet_block_forward.7} parent=5 // pred_fallthru
      _
    %p151 = scmp.lt.s32.totalorder %s10, 4
    // Predicated region
    $region21: #{resnet_block_forward.7} parent=5 // pred_check
      %p152 = pneg %p151
    $region22: #{resnet_block_forward.7} parent=5 // pred_check_branch
      %154 = sbr.rel (%p152) target = $region24
    $region23: #{resnet_block_forward.7} parent=5 // pred_region
      // Predicated region
      $region25: #{resnet_block_forward.7} parent=23 // pred_check
        %p155 = pneg %p30
      $region26: #{resnet_block_forward.7} parent=23 // pred_check_branch
        %157 = sbr.rel (%p155) target = $region28
      $region27: #{resnet_block_forward.7} parent=23 // pred_region
        %s158 = smul.u32 16, %s10
        %p159 = scmp.lt.s32.totalorder %s158, 63
        %s160 = scalar_select %p159, %s158, 63
        %s161 = smul.addr %s160, 4
        %s162 = scalar_lea.vmem %s0, %s161
        %s163 = smul.u32 16, %s10
      $region28: #{resnet_block_forward.7} parent=23 // pred_fallthru
        _
      // Predicated region
      $region29: #{resnet_block_forward.7} parent=23 // pred_check
        %p164 = pneg %p98
      $region30: #{resnet_block_forward.7} parent=23 // pred_check_branch
        %166 = sbr.rel (%p164) target = $region32
      $region31: #{resnet_block_forward.7} parent=23 // pred_region
        %s167 = smul.u32 16, %s10
        %p168 = scmp.lt.s32.totalorder %s167, 63
        %s169 = scalar_select %p168, %s167, 63
        %s170 = smul.addr %s169, 4
        %s171 = scalar_lea.vmem %s3, %s170
        %s172 = smul.u32 16, %s10
      $region32: #{resnet_block_forward.7} parent=23 // pred_fallthru
        _
    $region24: #{resnet_block_forward.7} parent=5 // pred_fallthru
      _
    %p173 = scmp.le.s32.totalorder 1, %s10
    %p174 = scmp.lt.s32.totalorder %s10, 5
    %p175 = pnand %p173, %p174
    %p176 = pneg %p175
    // Predicated region
    $region33: #{resnet_block_forward.7} parent=5 // pred_check
      _
    $region34: #{resnet_block_forward.7} parent=5 // pred_check_branch
      %178 = sbr.rel (%p175) target = $region36
    $region35: #{resnet_block_forward.7} parent=5 // pred_region
      %s179 = ssub.s32 %s10, 1
      %s180 = smul.u32 16, %s15
      %p181 = scmp.lt.s32.totalorder %s180, 63
      %s182 = scalar_select %p181, %s180, 63
      %s183 = smul.addr %s182, 4
      %s184 = scalar_lea.vmem %s0, %s183
      %p185 = pneg %p36
      %p186 = pneg %p33
      %p187 = pneg %p57
      %p188 = pneg %p54
      %p189 = pneg %p78
      %p190 = pneg %p75
      %s191 = smul.u32 16, %s15
      %p192 = scmp.lt.s32.totalorder %s191, 63
      %s193 = scalar_select %p192, %s191, 63
      %s194 = smul.addr %s193, 4
      %s195 = scalar_lea.vmem %s3, %s194
      %p196 = pneg %p104
      %p197 = pneg %p101
      %p198 = pneg %p130
      %p199 = pneg %p127
      %s200 = smul.u32 16, %s15
      %p201 = scmp.lt.s32.totalorder %s200, 63
      %s202 = scalar_select %p201, %s200, 63
      %s203 = smul.addr %s202, 8
      %s204 = scalar_lea.vmem %s4, %s203
      %s205 = smul.u32 16, %s15
      %p206 = scmp.lt.s32.totalorder %s205, 63
      %s207 = scalar_select %p206, %s205, 63
      %s208 = smul.addr %s207, 4
      %s209 = scalar_lea.vmem %s0, %s208
      %s210 = smul.u32 16, %s15
      %s211 = smul.u32 16, %s15
      %p212 = scmp.lt.s32.totalorder %s211, 63
      %s213 = scalar_select %p212, %s211, 63
      %s214 = smul.addr %s213, 4
      %s215 = scalar_lea.vmem %s3, %s214
      %s216 = smul.u32 16, %s15
      %s217 = smul.u32 16, %s15
      %p218 = scmp.lt.s32.totalorder %s217, 63
      %s219 = scalar_select %p218, %s217, 63
      %s220 = smul.addr %s219, 8
      %s221 = scalar_lea.vmem %s4, %s220
      %s222 = smul.u32 16, %s15
      %v223 = vld [vmem:[%s209] sm:$0xf]
      %v224 = vld [vmem:[%s209 + $0x4] sm:$0xf]
      %v225 = vld [vmem:[%s209 + $0x8] sm:$0xf]
      %v226 = vld [vmem:[%s209 + $0xc] sm:$0xf]
      %v227 = vld [vmem:[%s209 + $0x10] sm:$0xf]
      %v228 = vld [vmem:[%s209 + $0x14] sm:$0xf]
      %v229 = vld [vmem:[%s209 + $0x18] sm:$0xf]
      %v230 = vld [vmem:[%s209 + $0x1c] sm:$0xf]
      %v231 = vld [vmem:[%s209 + $0x20] sm:$0xf]
      %v232 = vld [vmem:[%s209 + $0x24] sm:$0xf]
      %v233 = vld [vmem:[%s209 + $0x28] sm:$0xf]
      %v234 = vld [vmem:[%s209 + $0x2c] sm:$0xf]
      %v235 = vld [vmem:[%s209 + $0x30] sm:$0xf]
      %v236 = vld [vmem:[%s209 + $0x34] sm:$0xf]
      %v237 = vld [vmem:[%s209 + $0x38] sm:$0xf]
      %v238 = vld [vmem:[%s209 + $0x3c] sm:$0xf]
      %v239 = vunpack.c.l.bf16 %v223
      %v240 = vunpack.c.l.bf16 %v224
      %v241 = vunpack.c.l.bf16 %v225
      %v242 = vunpack.c.l.bf16 %v226
      %v243 = vunpack.c.l.bf16 %v227
      %v244 = vunpack.c.l.bf16 %v228
      %v245 = vunpack.c.l.bf16 %v229
      %v246 = vunpack.c.l.bf16 %v230
      %v247 = vunpack.c.l.bf16 %v231
      %v248 = vunpack.c.l.bf16 %v232
      %v249 = vunpack.c.l.bf16 %v233
      %v250 = vunpack.c.l.bf16 %v234
      %v251 = vunpack.c.l.bf16 %v235
      %v252 = vunpack.c.l.bf16 %v236
      %v253 = vunpack.c.l.bf16 %v237
      %v254 = vunpack.c.l.bf16 %v238
      %v255 = vld [vmem:[%s1] sm:$0x1]
      %v257 = vlaneseq
      %v258 = vshrl.u32 %v257, 7
      %v259 = vsub.s32 0, %v258
      %v260 = vrot.slane %v255, %v259
      %v262 = vmul.f32 %v239, %v260
      %v263 = vmul.f32 %v240, %v260
      %v264 = vmul.f32 %v241, %v260
      %v265 = vmul.f32 %v242, %v260
      %v266 = vmul.f32 %v243, %v260
      %v267 = vmul.f32 %v244, %v260
      %v268 = vmul.f32 %v245, %v260
      %v269 = vmul.f32 %v246, %v260
      %v270 = vmul.f32 %v247, %v260
      %v271 = vmul.f32 %v248, %v260
      %v272 = vmul.f32 %v249, %v260
      %v273 = vmul.f32 %v250, %v260
      %v274 = vmul.f32 %v251, %v260
      %v275 = vmul.f32 %v252, %v260
      %v276 = vmul.f32 %v253, %v260
      %v277 = vmul.f32 %v254, %v260
      %v278 = vld [vmem:[%s2] sm:$0x1]
      %v280 = vlaneseq
      %v281 = vshrl.u32 %v280, 7
      %v282 = vsub.s32 0, %v281
      %v283 = vrot.slane %v278, %v282
      %v285 = vadd.f32 %v262, %v283
      %v286 = vadd.f32 %v263, %v283
      %v287 = vadd.f32 %v264, %v283
      %v288 = vadd.f32 %v265, %v283
      %v289 = vadd.f32 %v266, %v283
      %v290 = vadd.f32 %v267, %v283
      %v291 = vadd.f32 %v268, %v283
      %v292 = vadd.f32 %v269, %v283
      %v293 = vadd.f32 %v270, %v283
      %v294 = vadd.f32 %v271, %v283
      %v295 = vadd.f32 %v272, %v283
      %v296 = vadd.f32 %v273, %v283
      %v297 = vadd.f32 %v274, %v283
      %v298 = vadd.f32 %v275, %v283
      %v299 = vadd.f32 %v276, %v283
      %v300 = vadd.f32 %v277, %v283
      %v301 = vld [vmem:[%s215] sm:$0xf]
      %v302 = vld [vmem:[%s215 + $0x4] sm:$0xf]
      %v303 = vld [vmem:[%s215 + $0x8] sm:$0xf]
      %v304 = vld [vmem:[%s215 + $0xc] sm:$0xf]
      %v305 = vld [vmem:[%s215 + $0x10] sm:$0xf]
      %v306 = vld [vmem:[%s215 + $0x14] sm:$0xf]
      %v307 = vld [vmem:[%s215 + $0x18] sm:$0xf]
      %v308 = vld [vmem:[%s215 + $0x1c] sm:$0xf]
      %v309 = vld [vmem:[%s215 + $0x20] sm:$0xf]
      %v310 = vld [vmem:[%s215 + $0x24] sm:$0xf]
      %v311 = vld [vmem:[%s215 + $0x28] sm:$0xf]
      %v312 = vld [vmem:[%s215 + $0x2c] sm:$0xf]
      %v313 = vld [vmem:[%s215 + $0x30] sm:$0xf]
      %v314 = vld [vmem:[%s215 + $0x34] sm:$0xf]
      %v315 = vld [vmem:[%s215 + $0x38] sm:$0xf]
      %v316 = vld [vmem:[%s215 + $0x3c] sm:$0xf]
      %v317 = vunpack.c.l.bf16 %v301
      %v318 = vunpack.c.l.bf16 %v302
      %v319 = vunpack.c.l.bf16 %v303
      %v320 = vunpack.c.l.bf16 %v304
      %v321 = vunpack.c.l.bf16 %v305
      %v322 = vunpack.c.l.bf16 %v306
      %v323 = vunpack.c.l.bf16 %v307
      %v324 = vunpack.c.l.bf16 %v308
      %v325 = vunpack.c.l.bf16 %v309
      %v326 = vunpack.c.l.bf16 %v310
      %v327 = vunpack.c.l.bf16 %v311
      %v328 = vunpack.c.l.bf16 %v312
      %v329 = vunpack.c.l.bf16 %v313
      %v330 = vunpack.c.l.bf16 %v314
      %v331 = vunpack.c.l.bf16 %v315
      %v332 = vunpack.c.l.bf16 %v316
      %v333 = vadd.f32 %v285, %v317
      %v334 = vadd.f32 %v286, %v318
      %v335 = vadd.f32 %v287, %v319
      %v336 = vadd.f32 %v288, %v320
      %v337 = vadd.f32 %v289, %v321
      %v338 = vadd.f32 %v290, %v322
      %v339 = vadd.f32 %v291, %v323
      %v340 = vadd.f32 %v292, %v324
      %v341 = vadd.f32 %v293, %v325
      %v342 = vadd.f32 %v294, %v326
      %v343 = vadd.f32 %v295, %v327
      %v344 = vadd.f32 %v296, %v328
      %v345 = vadd.f32 %v297, %v329
      %v346 = vadd.f32 %v298, %v330
      %v347 = vadd.f32 %v299, %v331
      %v348 = vadd.f32 %v300, %v332
      %v349 = vmax.f32 %v333, 0.0
      %v350 = vmax.f32 %v334, 0.0
      %v351 = vmax.f32 %v335, 0.0
      %v352 = vmax.f32 %v336, 0.0
      %v353 = vmax.f32 %v337, 0.0
      %v354 = vmax.f32 %v338, 0.0
      %v355 = vmax.f32 %v339, 0.0
      %v356 = vmax.f32 %v340, 0.0
      %v357 = vmax.f32 %v341, 0.0
      %v358 = vmax.f32 %v342, 0.0
      %v359 = vmax.f32 %v343, 0.0
      %v360 = vmax.f32 %v344, 0.0
      %v361 = vmax.f32 %v345, 0.0
      %v362 = vmax.f32 %v346, 0.0
      %v363 = vmax.f32 %v347, 0.0
      %v364 = vmax.f32 %v348, 0.0
      %365 = vst [vmem:[%s221] sm:$0xff] %v349
      %366 = vst [vmem:[%s221 + $0x8] sm:$0xff] %v350
      %367 = vst [vmem:[%s221 + $0x10] sm:$0xff] %v351
      %368 = vst [vmem:[%s221 + $0x18] sm:$0xff] %v352
      %369 = vst [vmem:[%s221 + $0x20] sm:$0xff] %v353
      %370 = vst [vmem:[%s221 + $0x28] sm:$0xff] %v354
      %371 = vst [vmem:[%s221 + $0x30] sm:$0xff] %v355
      %372 = vst [vmem:[%s221 + $0x38] sm:$0xff] %v356
      %373 = vst [vmem:[%s221 + $0x40] sm:$0xff] %v357
      %374 = vst [vmem:[%s221 + $0x48] sm:$0xff] %v358
      %375 = vst [vmem:[%s221 + $0x50] sm:$0xff] %v359
      %376 = vst [vmem:[%s221 + $0x58] sm:$0xff] %v360
      %377 = vst [vmem:[%s221 + $0x60] sm:$0xff] %v361
      %378 = vst [vmem:[%s221 + $0x68] sm:$0xff] %v362
      %379 = vst [vmem:[%s221 + $0x70] sm:$0xff] %v363
      %380 = vst [vmem:[%s221 + $0x78] sm:$0xff] %v364
      %s381 = smul.u32 16, %s15
      %p382 = scmp.lt.s32.totalorder %s381, 63
      %s383 = scalar_select %p382, %s381, 63
      %s384 = smul.addr %s383, 8
      %s385 = scalar_lea.vmem %s4, %s384
      // Predicated region
      $region37: #{resnet_block_forward.7} parent=35 // pred_check
        %p386 = pneg %p127
      $region38: #{resnet_block_forward.7} parent=35 // pred_check_branch
        %388 = sbr.rel (%p386) target = $region40
      $region39: #{resnet_block_forward.7} parent=35 // pred_region
        %s389 = smul.u32 16, %s15
      $region40: #{resnet_block_forward.7} parent=35 // pred_fallthru
        _
    $region36: #{resnet_block_forward.7} parent=5 // pred_fallthru
      _
    %p390 = scmp.le.s32.totalorder 2, %s10
    // Predicated region
    $region41: #{resnet_block_forward.7} parent=5 // pred_check
      %p391 = pneg %p390
    $region42: #{resnet_block_forward.7} parent=5 // pred_check_branch
      %393 = sbr.rel (%p391) target = $region44
    $region43: #{resnet_block_forward.7} parent=5 // pred_region
      %s394 = ssub.s32 %s10, 2
      // Predicated region
      $region45: #{resnet_block_forward.7} parent=43 // pred_check
        %p395 = pneg %p133
      $region46: #{resnet_block_forward.7} parent=43 // pred_check_branch
        %397 = sbr.rel (%p395) target = $region48
      $region47: #{resnet_block_forward.7} parent=43 // pred_region
        %s398 = smul.u32 16, %s16
        %p399 = scmp.lt.s32.totalorder %s398, 63
        %s400 = scalar_select %p399, %s398, 63
        %s401 = smul.addr %s400, 8
        %s402 = scalar_lea.vmem %s4, %s401
      $region48: #{resnet_block_forward.7} parent=43 // pred_fallthru
        _
    $region44: #{resnet_block_forward.7} parent=5 // pred_fallthru
      _
  $region6: #{resnet_block_forward.7} parent=0 // loop_footer
    %s14 = sadd.s32 1, %s10
  $region7: #{resnet_block_forward.7} parent=0 // loop_footer_branch
    %9 = sbr.rel target = $region3
  $region8: #{resnet_block_forward.7} parent=0 // loop_exit
    _

</llo_original>
